<compile_context>
chip_gen: v7x
topology: tpu7x:2x2x1
jax: 0.10.0
libtpu: 0.0.40
codegen_flags: <defaults>
</compile_context>

<pallas_src>
import numpy as np
import jax
import jax.numpy as jnp
from jax.experimental import pallas as pl
from jax.experimental.pallas import tpu as pltpu

# ---------------- config (small shapes consistent with the module) ----------
B = 8            # batch
INP_DIM = 16     # input feature dim
FINAL_OUT = 4    # final_out_dim
N_D = 8
N_A = 8
N_SHARED = 2
N_IND = 2
N_STEPS = 3      # first_step + (N_STEPS - 1) decision steps
RELAX = 1.2      # dead in the forward pass (priors never propagated)
VBS = 128        # B < VBS -> GBN == plain BatchNorm over the batch
H = N_D + N_A
EPS_BN = 1e-5
SCALE = float(np.sqrt(0.5))
LANES = 128


# ---------------- pure-jnp building blocks (used inside the kernel) ---------
def _bn_train(x, gamma, beta):
    """BatchNorm1d, training mode, one-pass: biased var = E[x^2] - mean^2."""
    inv_n = 1.0 / x.shape[0]
    mean = jnp.sum(x, axis=0, keepdims=True) * inv_n
    mean_sq = jnp.sum(x * x, axis=0, keepdims=True) * inv_n
    var = mean_sq - mean * mean
    return (x - mean) * jax.lax.rsqrt(var + EPS_BN) * gamma + beta


def _glu(x, W, b, gamma, beta):
    z = jnp.dot(x, W, preferred_element_type=jnp.float32) + b
    z = _bn_train(z, gamma, beta)
    return z[:, :H] * jax.nn.sigmoid(z[:, H:])


def _feature_transformer(x, shared_fc, ft_p):
    # first shared GLU (no residual), then residual + sqrt(0.5) scaling
    h = _glu(x, shared_fc[0]['W'], shared_fc[0]['b'],
             ft_p['shared_bn'][0]['gamma'], ft_p['shared_bn'][0]['beta'])
    for i in range(1, N_SHARED):
        g = _glu(h, shared_fc[i]['W'], shared_fc[i]['b'],
                 ft_p['shared_bn'][i]['gamma'], ft_p['shared_bn'][i]['beta'])
        h = (h + g) * SCALE
    for i in range(N_IND):
        gp = ft_p['indep'][i]
        g = _glu(h, gp['W'], gp['b'], gp['gamma'], gp['beta'])
        h = (h + g) * SCALE
    return h


def _tabnet_forward(x, p):
    xb = _bn_train(x, p['bn0']['gamma'], p['bn0']['beta'])
    h = _feature_transformer(xb, p['shared_fc'], p['ft'][0])
    x_a = h[:, N_D:]
    out = jnp.zeros((x.shape[0], N_D), jnp.float32)
    loss = jnp.zeros((), jnp.float32)
    # `priors` in the reference module is created as ones and never updated
    # (AttentionTransformer's reassignment is local), so sigmoid(a * priors)
    # == sigmoid(a).  The dead multiply and ones-materialization are dropped.
    for s in range(N_STEPS - 1):
        ap = p['att'][s]
        a = jnp.dot(x_a, ap['W'], preferred_element_type=jnp.float32) + ap['b']
        a = _bn_train(a, ap['gamma'], ap['beta'])
        mask = jax.nn.sigmoid(a)
        loss = loss + jnp.mean(-mask * jnp.log(mask + 1e-10))
        h = _feature_transformer(xb * mask, p['shared_fc'], p['ft'][s + 1])
        out = out + jax.nn.relu(h[:, :N_D])
        x_a = h[:, N_D:]
    logits = jnp.dot(out, p['fc']['W'],
                     preferred_element_type=jnp.float32) + p['fc']['b']
    return logits, loss


# ---------------- parameter packing (one lane-dense slab) -------------------
def _round8(n):
    return ((n + 7) // 8) * 8


def pack_params(params):
    """Pack every (r, c) parameter leaf into one (rows, 128) f32 slab.

    Each leaf occupies rows [off, off+r) (8-aligned start, zero-padded) and
    columns [0, c).  Returns (slab, treedef, static layout of (off, r, c))
    in jax.tree_util.tree_flatten order so the kernel can rebuild the pytree
    with static slices.
    """
    flat, treedef = jax.tree_util.tree_flatten(params)
    layout = []
    off = 0
    for leaf in flat:
        r, c = leaf.shape
        assert c <= LANES
        layout.append((off, r, c))
        off += _round8(r)
    slab = np.zeros((max(_round8(off), 8), LANES), np.float32)
    for (o, r, c), leaf in zip(layout, flat):
        slab[o:o + r, :c] = np.asarray(leaf, np.float32)
    return jnp.asarray(slab), treedef, tuple(layout)


# ---------------- Pallas kernel ---------------------------------------------
def _make_kernel(treedef, layout):
    def kernel(x_ref, slab_ref, out_ref, loss_ref):
        # Recover every parameter leaf from the packed slab with static
        # (8-row-aligned) slices — no per-leaf DMA, no extra operands.
        leaves = [slab_ref[o:o + r, :c] for (o, r, c) in layout]
        p = jax.tree_util.tree_unflatten(treedef, leaves)
        logits, loss = _tabnet_forward(x_ref[...], p)
        out_ref[...] = logits
        loss_ref[...] = loss.reshape(1, 1)
    return kernel


def tabnet_pallas(x, params):
    slab, treedef, layout = pack_params(params)
    kernel = _make_kernel(treedef, layout)
    vmem = pl.BlockSpec(memory_space=pltpu.MemorySpace.VMEM)
    logits, loss = pl.pallas_call(
        kernel,
        out_shape=(
            jax.ShapeDtypeStruct((x.shape[0], FINAL_OUT), jnp.float32),
            jax.ShapeDtypeStruct((1, 1), jnp.float32),
        ),
        in_specs=[vmem, vmem],
        out_specs=(vmem, vmem),
    )(x, slab)
    return logits, loss.reshape(1)


# ---------------- deterministic parameter init ------------------------------
def init_params(key):
    def linear(k, fan_in, fan_out):
        k1, k2 = jax.random.split(k)
        bound = 1.0 / np.sqrt(fan_in)
        return {
            'W': jax.random.uniform(k1, (fan_in, fan_out), jnp.float32,
                                    -bound, bound),
            'b': jax.random.uniform(k2, (1, fan_out), jnp.float32,
                                    -bound, bound),
        }

    def bn(dim):  # PyTorch BatchNorm1d init: weight=1, bias=0
        return {'gamma': jnp.ones((1, dim), jnp.float32),
                'beta': jnp.zeros((1, dim), jnp.float32)}

    keys = iter(jax.random.split(key, 64))
    params = {'bn0': bn(INP_DIM)}

    shared_fc = [linear(next(keys), INP_DIM, 2 * H)]
    for _ in range(N_SHARED - 1):
        shared_fc.append(linear(next(keys), H, 2 * H))
    params['shared_fc'] = shared_fc  # weights shared across all FTs

    ft = []
    for _ in range(N_STEPS):  # first_step + decision steps
        indep = []
        for _ in range(N_IND):
            lin = linear(next(keys), H, 2 * H)
            lin.update(bn(2 * H))
            indep.append(lin)
        ft.append({'shared_bn': [bn(2 * H) for _ in range(N_SHARED)],
                   'indep': indep})
    params['ft'] = ft

    att = []
    for _ in range(N_STEPS - 1):
        lin = linear(next(keys), N_A, INP_DIM)
        lin.update(bn(INP_DIM))
        att.append(lin)
    params['att'] = att

    params['fc'] = linear(next(keys), N_D, FINAL_OUT)
    return params


# ---------------- main -------------------------------------------------------
if __name__ == "__main__":
    key = jax.random.PRNGKey(0)
    kx, kp = jax.random.split(key)
    x = jax.random.normal(kx, (B, INP_DIM), jnp.float32)
    params = init_params(kp)

    logits, loss = tabnet_pallas(x, params)
    jax.block_until_ready((logits, loss))

    # pure-JAX reference check of the same forward semantics
    ref_logits, ref_loss = _tabnet_forward(x, params)
    assert logits.shape == (B, FINAL_OUT) and loss.shape == (1,)
    assert jnp.allclose(logits, ref_logits, atol=1e-4, rtol=1e-4)
    assert jnp.allclose(loss[0], ref_loss, atol=1e-5, rtol=1e-5)

    print("KERNEL_OK")
</pallas_src>

<mosaic_0001>
module attributes {stable_mosaic.version = 11 : i64} {
  func.func @kernel(%arg0: memref<8x16xf32, #tpu.memory_space<vmem>>, %arg1: memref<480x128xf32, #tpu.memory_space<vmem>>, %arg2: memref<8x4xf32, #tpu.memory_space<vmem>>, %arg3: memref<1x1xf32, #tpu.memory_space<vmem>>) attributes {dimension_semantics = [], scalar_prefetch = 0 : i64, scratch_operands = 0 : i64, tpu.core_type = #tpu.core_type<tc>} {
    %c0 = arith.constant 0 : index
    %c0_0 = arith.constant 0 : index
    %0 = vector.load %arg1[%c0, %c0_0] : memref<480x128xf32, #tpu.memory_space<vmem>>, vector<8x16xf32>
    %c8 = arith.constant 8 : index
    %c0_1 = arith.constant 0 : index
    %1 = vector.load %arg1[%c8, %c0_1] : memref<480x128xf32, #tpu.memory_space<vmem>>, vector<1x16xf32>
    %c16 = arith.constant 16 : index
    %c0_2 = arith.constant 0 : index
    %2 = vector.load %arg1[%c16, %c0_2] : memref<480x128xf32, #tpu.memory_space<vmem>>, vector<1x16xf32>
    %c24 = arith.constant 24 : index
    %c0_3 = arith.constant 0 : index
    %3 = vector.load %arg1[%c24, %c0_3] : memref<480x128xf32, #tpu.memory_space<vmem>>, vector<1x16xf32>
    %c32 = arith.constant 32 : index
    %c0_4 = arith.constant 0 : index
    %4 = vector.load %arg1[%c32, %c0_4] : memref<480x128xf32, #tpu.memory_space<vmem>>, vector<8x16xf32>
    %c40 = arith.constant 40 : index
    %c0_5 = arith.constant 0 : index
    %5 = vector.load %arg1[%c40, %c0_5] : memref<480x128xf32, #tpu.memory_space<vmem>>, vector<1x16xf32>
    %c48 = arith.constant 48 : index
    %c0_6 = arith.constant 0 : index
    %6 = vector.load %arg1[%c48, %c0_6] : memref<480x128xf32, #tpu.memory_space<vmem>>, vector<1x16xf32>
    %c56 = arith.constant 56 : index
    %c0_7 = arith.constant 0 : index
    %7 = vector.load %arg1[%c56, %c0_7] : memref<480x128xf32, #tpu.memory_space<vmem>>, vector<1x16xf32>
    %c64 = arith.constant 64 : index
    %c0_8 = arith.constant 0 : index
    %8 = vector.load %arg1[%c64, %c0_8] : memref<480x128xf32, #tpu.memory_space<vmem>>, vector<1x16xf32>
    %c72 = arith.constant 72 : index
    %c0_9 = arith.constant 0 : index
    %9 = vector.load %arg1[%c72, %c0_9] : memref<480x128xf32, #tpu.memory_space<vmem>>, vector<1x16xf32>
    %c80 = arith.constant 80 : index
    %c0_10 = arith.constant 0 : index
    %10 = vector.load %arg1[%c80, %c0_10] : memref<480x128xf32, #tpu.memory_space<vmem>>, vector<8x4xf32>
    %c88 = arith.constant 88 : index
    %c0_11 = arith.constant 0 : index
    %11 = vector.load %arg1[%c88, %c0_11] : memref<480x128xf32, #tpu.memory_space<vmem>>, vector<1x4xf32>
    %c96 = arith.constant 96 : index
    %c0_12 = arith.constant 0 : index
    %12 = vector.load %arg1[%c96, %c0_12] : memref<480x128xf32, #tpu.memory_space<vmem>>, vector<16x32xf32>
    %c112 = arith.constant 112 : index
    %c0_13 = arith.constant 0 : index
    %13 = vector.load %arg1[%c112, %c0_13] : memref<480x128xf32, #tpu.memory_space<vmem>>, vector<1x32xf32>
    %c120 = arith.constant 120 : index
    %c0_14 = arith.constant 0 : index
    %14 = vector.load %arg1[%c120, %c0_14] : memref<480x128xf32, #tpu.memory_space<vmem>>, vector<1x32xf32>
    %c128 = arith.constant 128 : index
    %c0_15 = arith.constant 0 : index
    %15 = vector.load %arg1[%c128, %c0_15] : memref<480x128xf32, #tpu.memory_space<vmem>>, vector<1x32xf32>
    %c136 = arith.constant 136 : index
    %c0_16 = arith.constant 0 : index
    %16 = vector.load %arg1[%c136, %c0_16] : memref<480x128xf32, #tpu.memory_space<vmem>>, vector<16x32xf32>
    %c152 = arith.constant 152 : index
    %c0_17 = arith.constant 0 : index
    %17 = vector.load %arg1[%c152, %c0_17] : memref<480x128xf32, #tpu.memory_space<vmem>>, vector<1x32xf32>
    %c160 = arith.constant 160 : index
    %c0_18 = arith.constant 0 : index
    %18 = vector.load %arg1[%c160, %c0_18] : memref<480x128xf32, #tpu.memory_space<vmem>>, vector<1x32xf32>
    %c168 = arith.constant 168 : index
    %c0_19 = arith.constant 0 : index
    %19 = vector.load %arg1[%c168, %c0_19] : memref<480x128xf32, #tpu.memory_space<vmem>>, vector<1x32xf32>
    %c176 = arith.constant 176 : index
    %c0_20 = arith.constant 0 : index
    %20 = vector.load %arg1[%c176, %c0_20] : memref<480x128xf32, #tpu.memory_space<vmem>>, vector<1x32xf32>
    %c184 = arith.constant 184 : index
    %c0_21 = arith.constant 0 : index
    %21 = vector.load %arg1[%c184, %c0_21] : memref<480x128xf32, #tpu.memory_space<vmem>>, vector<1x32xf32>
    %c192 = arith.constant 192 : index
    %c0_22 = arith.constant 0 : index
    %22 = vector.load %arg1[%c192, %c0_22] : memref<480x128xf32, #tpu.memory_space<vmem>>, vector<1x32xf32>
    %c200 = arith.constant 200 : index
    %c0_23 = arith.constant 0 : index
    %23 = vector.load %arg1[%c200, %c0_23] : memref<480x128xf32, #tpu.memory_space<vmem>>, vector<1x32xf32>
    %c208 = arith.constant 208 : index
    %c0_24 = arith.constant 0 : index
    %24 = vector.load %arg1[%c208, %c0_24] : memref<480x128xf32, #tpu.memory_space<vmem>>, vector<16x32xf32>
    %c224 = arith.constant 224 : index
    %c0_25 = arith.constant 0 : index
    %25 = vector.load %arg1[%c224, %c0_25] : memref<480x128xf32, #tpu.memory_space<vmem>>, vector<1x32xf32>
    %c232 = arith.constant 232 : index
    %c0_26 = arith.constant 0 : index
    %26 = vector.load %arg1[%c232, %c0_26] : memref<480x128xf32, #tpu.memory_space<vmem>>, vector<1x32xf32>
    %c240 = arith.constant 240 : index
    %c0_27 = arith.constant 0 : index
    %27 = vector.load %arg1[%c240, %c0_27] : memref<480x128xf32, #tpu.memory_space<vmem>>, vector<1x32xf32>
    %c248 = arith.constant 248 : index
    %c0_28 = arith.constant 0 : index
    %28 = vector.load %arg1[%c248, %c0_28] : memref<480x128xf32, #tpu.memory_space<vmem>>, vector<16x32xf32>
    %c264 = arith.constant 264 : index
    %c0_29 = arith.constant 0 : index
    %29 = vector.load %arg1[%c264, %c0_29] : memref<480x128xf32, #tpu.memory_space<vmem>>, vector<1x32xf32>
    %c272 = arith.constant 272 : index
    %c0_30 = arith.constant 0 : index
    %30 = vector.load %arg1[%c272, %c0_30] : memref<480x128xf32, #tpu.memory_space<vmem>>, vector<1x32xf32>
    %c280 = arith.constant 280 : index
    %c0_31 = arith.constant 0 : index
    %31 = vector.load %arg1[%c280, %c0_31] : memref<480x128xf32, #tpu.memory_space<vmem>>, vector<1x32xf32>
    %c288 = arith.constant 288 : index
    %c0_32 = arith.constant 0 : index
    %32 = vector.load %arg1[%c288, %c0_32] : memref<480x128xf32, #tpu.memory_space<vmem>>, vector<1x32xf32>
    %c296 = arith.constant 296 : index
    %c0_33 = arith.constant 0 : index
    %33 = vector.load %arg1[%c296, %c0_33] : memref<480x128xf32, #tpu.memory_space<vmem>>, vector<1x32xf32>
    %c304 = arith.constant 304 : index
    %c0_34 = arith.constant 0 : index
    %34 = vector.load %arg1[%c304, %c0_34] : memref<480x128xf32, #tpu.memory_space<vmem>>, vector<1x32xf32>
    %c312 = arith.constant 312 : index
    %c0_35 = arith.constant 0 : index
    %35 = vector.load %arg1[%c312, %c0_35] : memref<480x128xf32, #tpu.memory_space<vmem>>, vector<1x32xf32>
    %c320 = arith.constant 320 : index
    %c0_36 = arith.constant 0 : index
    %36 = vector.load %arg1[%c320, %c0_36] : memref<480x128xf32, #tpu.memory_space<vmem>>, vector<16x32xf32>
    %c336 = arith.constant 336 : index
    %c0_37 = arith.constant 0 : index
    %37 = vector.load %arg1[%c336, %c0_37] : memref<480x128xf32, #tpu.memory_space<vmem>>, vector<1x32xf32>
    %c344 = arith.constant 344 : index
    %c0_38 = arith.constant 0 : index
    %38 = vector.load %arg1[%c344, %c0_38] : memref<480x128xf32, #tpu.memory_space<vmem>>, vector<1x32xf32>
    %c352 = arith.constant 352 : index
    %c0_39 = arith.constant 0 : index
    %39 = vector.load %arg1[%c352, %c0_39] : memref<480x128xf32, #tpu.memory_space<vmem>>, vector<1x32xf32>
    %c360 = arith.constant 360 : index
    %c0_40 = arith.constant 0 : index
    %40 = vector.load %arg1[%c360, %c0_40] : memref<480x128xf32, #tpu.memory_space<vmem>>, vector<16x32xf32>
    %c376 = arith.constant 376 : index
    %c0_41 = arith.constant 0 : index
    %41 = vector.load %arg1[%c376, %c0_41] : memref<480x128xf32, #tpu.memory_space<vmem>>, vector<1x32xf32>
    %c384 = arith.constant 384 : index
    %c0_42 = arith.constant 0 : index
    %42 = vector.load %arg1[%c384, %c0_42] : memref<480x128xf32, #tpu.memory_space<vmem>>, vector<1x32xf32>
    %c392 = arith.constant 392 : index
    %c0_43 = arith.constant 0 : index
    %43 = vector.load %arg1[%c392, %c0_43] : memref<480x128xf32, #tpu.memory_space<vmem>>, vector<1x32xf32>
    %c400 = arith.constant 400 : index
    %c0_44 = arith.constant 0 : index
    %44 = vector.load %arg1[%c400, %c0_44] : memref<480x128xf32, #tpu.memory_space<vmem>>, vector<1x32xf32>
    %c408 = arith.constant 408 : index
    %c0_45 = arith.constant 0 : index
    %45 = vector.load %arg1[%c408, %c0_45] : memref<480x128xf32, #tpu.memory_space<vmem>>, vector<1x32xf32>
    %c416 = arith.constant 416 : index
    %c0_46 = arith.constant 0 : index
    %46 = vector.load %arg1[%c416, %c0_46] : memref<480x128xf32, #tpu.memory_space<vmem>>, vector<1x32xf32>
    %c424 = arith.constant 424 : index
    %c0_47 = arith.constant 0 : index
    %47 = vector.load %arg1[%c424, %c0_47] : memref<480x128xf32, #tpu.memory_space<vmem>>, vector<1x32xf32>
    %c432 = arith.constant 432 : index
    %c0_48 = arith.constant 0 : index
    %48 = vector.load %arg1[%c432, %c0_48] : memref<480x128xf32, #tpu.memory_space<vmem>>, vector<16x32xf32>
    %c448 = arith.constant 448 : index
    %c0_49 = arith.constant 0 : index
    %49 = vector.load %arg1[%c448, %c0_49] : memref<480x128xf32, #tpu.memory_space<vmem>>, vector<1x32xf32>
    %c456 = arith.constant 456 : index
    %c0_50 = arith.constant 0 : index
    %50 = vector.load %arg1[%c456, %c0_50] : memref<480x128xf32, #tpu.memory_space<vmem>>, vector<16x32xf32>
    %c472 = arith.constant 472 : index
    %c0_51 = arith.constant 0 : index
    %51 = vector.load %arg1[%c472, %c0_51] : memref<480x128xf32, #tpu.memory_space<vmem>>, vector<1x32xf32>
    %c0_52 = arith.constant 0 : index
    %c0_53 = arith.constant 0 : index
    %52 = vector.load %arg0[%c0_52, %c0_53] : memref<8x16xf32, #tpu.memory_space<vmem>>, vector<8x16xf32>
    %cst = arith.constant dense<0.000000e+00> : vector<16xf32>
    %53 = vector.multi_reduction <add>, %52, %cst [0] : vector<8x16xf32> to vector<16xf32>
    %54 = vector.shape_cast %53 : vector<16xf32> to vector<1x16xf32>
    %cst_54 = arith.constant 1.250000e-01 : f32
    %55 = vector.broadcast %cst_54 : f32 to vector<1x16xf32>
    %56 = arith.mulf %54, %55 : vector<1x16xf32>
    %57 = arith.mulf %52, %52 : vector<8x16xf32>
    %cst_55 = arith.constant dense<0.000000e+00> : vector<16xf32>
    %58 = vector.multi_reduction <add>, %57, %cst_55 [0] : vector<8x16xf32> to vector<16xf32>
    %59 = vector.shape_cast %58 : vector<16xf32> to vector<1x16xf32>
    %cst_56 = arith.constant 1.250000e-01 : f32
    %60 = vector.broadcast %cst_56 : f32 to vector<1x16xf32>
    %61 = arith.mulf %59, %60 : vector<1x16xf32>
    %62 = arith.mulf %56, %56 : vector<1x16xf32>
    %63 = arith.subf %61, %62 : vector<1x16xf32>
    %64 = vector.broadcast %56 : vector<1x16xf32> to vector<8x16xf32>
    %65 = arith.subf %52, %64 : vector<8x16xf32>
    %cst_57 = arith.constant 9.99999974E-6 : f32
    %66 = vector.broadcast %cst_57 : f32 to vector<1x16xf32>
    %67 = arith.addf %63, %66 : vector<1x16xf32>
    %68 = math.rsqrt %67 : vector<1x16xf32>
    %69 = vector.broadcast %68 : vector<1x16xf32> to vector<8x16xf32>
    %70 = arith.mulf %65, %69 : vector<8x16xf32>
    %71 = vector.broadcast %9 : vector<1x16xf32> to vector<8x16xf32>
    %72 = arith.mulf %70, %71 : vector<8x16xf32>
    %73 = vector.broadcast %8 : vector<1x16xf32> to vector<8x16xf32>
    %74 = arith.addf %72, %73 : vector<8x16xf32>
    %cst_58 = arith.constant dense<0.000000e+00> : vector<8x32xf32>
    %75 = tpu.matmul %74, %48, %cst_58 {dimension_numbers = #tpu.dot_dimension_numbers<[1], [0], [0], [1], [0, 0, 1, 1], [], []>} : vector<8x16xf32>, vector<16x32xf32>, vector<8x32xf32> -> vector<8x32xf32>
    %76 = vector.broadcast %49 : vector<1x32xf32> to vector<8x32xf32>
    %77 = arith.addf %75, %76 : vector<8x32xf32>
    %cst_59 = arith.constant dense<0.000000e+00> : vector<32xf32>
    %78 = vector.multi_reduction <add>, %77, %cst_59 [0] : vector<8x32xf32> to vector<32xf32>
    %79 = vector.shape_cast %78 : vector<32xf32> to vector<1x32xf32>
    %cst_60 = arith.constant 1.250000e-01 : f32
    %80 = vector.broadcast %cst_60 : f32 to vector<1x32xf32>
    %81 = arith.mulf %79, %80 : vector<1x32xf32>
    %82 = arith.mulf %77, %77 : vector<8x32xf32>
    %cst_61 = arith.constant dense<0.000000e+00> : vector<32xf32>
    %83 = vector.multi_reduction <add>, %82, %cst_61 [0] : vector<8x32xf32> to vector<32xf32>
    %84 = vector.shape_cast %83 : vector<32xf32> to vector<1x32xf32>
    %cst_62 = arith.constant 1.250000e-01 : f32
    %85 = vector.broadcast %cst_62 : f32 to vector<1x32xf32>
    %86 = arith.mulf %84, %85 : vector<1x32xf32>
    %87 = arith.mulf %81, %81 : vector<1x32xf32>
    %88 = arith.subf %86, %87 : vector<1x32xf32>
    %89 = vector.broadcast %81 : vector<1x32xf32> to vector<8x32xf32>
    %90 = arith.subf %77, %89 : vector<8x32xf32>
    %cst_63 = arith.constant 9.99999974E-6 : f32
    %91 = vector.broadcast %cst_63 : f32 to vector<1x32xf32>
    %92 = arith.addf %88, %91 : vector<1x32xf32>
    %93 = math.rsqrt %92 : vector<1x32xf32>
    %94 = vector.broadcast %93 : vector<1x32xf32> to vector<8x32xf32>
    %95 = arith.mulf %90, %94 : vector<8x32xf32>
    %96 = vector.broadcast %21 : vector<1x32xf32> to vector<8x32xf32>
    %97 = arith.mulf %95, %96 : vector<8x32xf32>
    %98 = vector.broadcast %20 : vector<1x32xf32> to vector<8x32xf32>
    %99 = arith.addf %97, %98 : vector<8x32xf32>
    %100 = vector.extract_strided_slice %99 {offsets = [0, 0], sizes = [8, 16], strides = [1, 1]} : vector<8x32xf32> to vector<8x16xf32>
    %101 = vector.extract_strided_slice %99 {offsets = [0, 16], sizes = [8, 16], strides = [1, 1]} : vector<8x32xf32> to vector<8x16xf32>
    %102 = arith.negf %101 : vector<8x16xf32>
    %103 = math.exp %102 : vector<8x16xf32>
    %cst_64 = arith.constant 1.000000e+00 : f32
    %104 = vector.broadcast %cst_64 : f32 to vector<8x16xf32>
    %105 = arith.addf %104, %103 : vector<8x16xf32>
    %106 = arith.divf %104, %105 : vector<8x16xf32>
    %107 = arith.mulf %100, %106 : vector<8x16xf32>
    %cst_65 = arith.constant dense<0.000000e+00> : vector<8x32xf32>
    %108 = tpu.matmul %107, %50, %cst_65 {dimension_numbers = #tpu.dot_dimension_numbers<[1], [0], [0], [1], [0, 0, 1, 1], [], []>} : vector<8x16xf32>, vector<16x32xf32>, vector<8x32xf32> -> vector<8x32xf32>
    %109 = vector.broadcast %51 : vector<1x32xf32> to vector<8x32xf32>
    %110 = arith.addf %108, %109 : vector<8x32xf32>
    %cst_66 = arith.constant dense<0.000000e+00> : vector<32xf32>
    %111 = vector.multi_reduction <add>, %110, %cst_66 [0] : vector<8x32xf32> to vector<32xf32>
    %112 = vector.shape_cast %111 : vector<32xf32> to vector<1x32xf32>
    %cst_67 = arith.constant 1.250000e-01 : f32
    %113 = vector.broadcast %cst_67 : f32 to vector<1x32xf32>
    %114 = arith.mulf %112, %113 : vector<1x32xf32>
    %115 = arith.mulf %110, %110 : vector<8x32xf32>
    %cst_68 = arith.constant dense<0.000000e+00> : vector<32xf32>
    %116 = vector.multi_reduction <add>, %115, %cst_68 [0] : vector<8x32xf32> to vector<32xf32>
    %117 = vector.shape_cast %116 : vector<32xf32> to vector<1x32xf32>
    %cst_69 = arith.constant 1.250000e-01 : f32
    %118 = vector.broadcast %cst_69 : f32 to vector<1x32xf32>
    %119 = arith.mulf %117, %118 : vector<1x32xf32>
    %120 = arith.mulf %114, %114 : vector<1x32xf32>
    %121 = arith.subf %119, %120 : vector<1x32xf32>
    %122 = vector.broadcast %114 : vector<1x32xf32> to vector<8x32xf32>
    %123 = arith.subf %110, %122 : vector<8x32xf32>
    %cst_70 = arith.constant 9.99999974E-6 : f32
    %124 = vector.broadcast %cst_70 : f32 to vector<1x32xf32>
    %125 = arith.addf %121, %124 : vector<1x32xf32>
    %126 = math.rsqrt %125 : vector<1x32xf32>
    %127 = vector.broadcast %126 : vector<1x32xf32> to vector<8x32xf32>
    %128 = arith.mulf %123, %127 : vector<8x32xf32>
    %129 = vector.broadcast %23 : vector<1x32xf32> to vector<8x32xf32>
    %130 = arith.mulf %128, %129 : vector<8x32xf32>
    %131 = vector.broadcast %22 : vector<1x32xf32> to vector<8x32xf32>
    %132 = arith.addf %130, %131 : vector<8x32xf32>
    %133 = vector.extract_strided_slice %132 {offsets = [0, 0], sizes = [8, 16], strides = [1, 1]} : vector<8x32xf32> to vector<8x16xf32>
    %134 = vector.extract_strided_slice %132 {offsets = [0, 16], sizes = [8, 16], strides = [1, 1]} : vector<8x32xf32> to vector<8x16xf32>
    %135 = arith.negf %134 : vector<8x16xf32>
    %136 = math.exp %135 : vector<8x16xf32>
    %cst_71 = arith.constant 1.000000e+00 : f32
    %137 = vector.broadcast %cst_71 : f32 to vector<8x16xf32>
    %138 = arith.addf %137, %136 : vector<8x16xf32>
    %139 = arith.divf %137, %138 : vector<8x16xf32>
    %140 = arith.mulf %133, %139 : vector<8x16xf32>
    %141 = arith.addf %107, %140 : vector<8x16xf32>
    %cst_72 = arith.constant 0.707106769 : f32
    %142 = vector.broadcast %cst_72 : f32 to vector<8x16xf32>
    %143 = arith.mulf %141, %142 : vector<8x16xf32>
    %cst_73 = arith.constant dense<0.000000e+00> : vector<8x32xf32>
    %144 = tpu.matmul %143, %12, %cst_73 {dimension_numbers = #tpu.dot_dimension_numbers<[1], [0], [0], [1], [0, 0, 1, 1], [], []>} : vector<8x16xf32>, vector<16x32xf32>, vector<8x32xf32> -> vector<8x32xf32>
    %145 = vector.broadcast %13 : vector<1x32xf32> to vector<8x32xf32>
    %146 = arith.addf %144, %145 : vector<8x32xf32>
    %cst_74 = arith.constant dense<0.000000e+00> : vector<32xf32>
    %147 = vector.multi_reduction <add>, %146, %cst_74 [0] : vector<8x32xf32> to vector<32xf32>
    %148 = vector.shape_cast %147 : vector<32xf32> to vector<1x32xf32>
    %cst_75 = arith.constant 1.250000e-01 : f32
    %149 = vector.broadcast %cst_75 : f32 to vector<1x32xf32>
    %150 = arith.mulf %148, %149 : vector<1x32xf32>
    %151 = arith.mulf %146, %146 : vector<8x32xf32>
    %cst_76 = arith.constant dense<0.000000e+00> : vector<32xf32>
    %152 = vector.multi_reduction <add>, %151, %cst_76 [0] : vector<8x32xf32> to vector<32xf32>
    %153 = vector.shape_cast %152 : vector<32xf32> to vector<1x32xf32>
    %cst_77 = arith.constant 1.250000e-01 : f32
    %154 = vector.broadcast %cst_77 : f32 to vector<1x32xf32>
    %155 = arith.mulf %153, %154 : vector<1x32xf32>
    %156 = arith.mulf %150, %150 : vector<1x32xf32>
    %157 = arith.subf %155, %156 : vector<1x32xf32>
    %158 = vector.broadcast %150 : vector<1x32xf32> to vector<8x32xf32>
    %159 = arith.subf %146, %158 : vector<8x32xf32>
    %cst_78 = arith.constant 9.99999974E-6 : f32
    %160 = vector.broadcast %cst_78 : f32 to vector<1x32xf32>
    %161 = arith.addf %157, %160 : vector<1x32xf32>
    %162 = math.rsqrt %161 : vector<1x32xf32>
    %163 = vector.broadcast %162 : vector<1x32xf32> to vector<8x32xf32>
    %164 = arith.mulf %159, %163 : vector<8x32xf32>
    %165 = vector.broadcast %15 : vector<1x32xf32> to vector<8x32xf32>
    %166 = arith.mulf %164, %165 : vector<8x32xf32>
    %167 = vector.broadcast %14 : vector<1x32xf32> to vector<8x32xf32>
    %168 = arith.addf %166, %167 : vector<8x32xf32>
    %169 = vector.extract_strided_slice %168 {offsets = [0, 0], sizes = [8, 16], strides = [1, 1]} : vector<8x32xf32> to vector<8x16xf32>
    %170 = vector.extract_strided_slice %168 {offsets = [0, 16], sizes = [8, 16], strides = [1, 1]} : vector<8x32xf32> to vector<8x16xf32>
    %171 = arith.negf %170 : vector<8x16xf32>
    %172 = math.exp %171 : vector<8x16xf32>
    %cst_79 = arith.constant 1.000000e+00 : f32
    %173 = vector.broadcast %cst_79 : f32 to vector<8x16xf32>
    %174 = arith.addf %173, %172 : vector<8x16xf32>
    %175 = arith.divf %173, %174 : vector<8x16xf32>
    %176 = arith.mulf %169, %175 : vector<8x16xf32>
    %177 = arith.addf %143, %176 : vector<8x16xf32>
    %cst_80 = arith.constant 0.707106769 : f32
    %178 = vector.broadcast %cst_80 : f32 to vector<8x16xf32>
    %179 = arith.mulf %177, %178 : vector<8x16xf32>
    %cst_81 = arith.constant dense<0.000000e+00> : vector<8x32xf32>
    %180 = tpu.matmul %179, %16, %cst_81 {dimension_numbers = #tpu.dot_dimension_numbers<[1], [0], [0], [1], [0, 0, 1, 1], [], []>} : vector<8x16xf32>, vector<16x32xf32>, vector<8x32xf32> -> vector<8x32xf32>
    %181 = vector.broadcast %17 : vector<1x32xf32> to vector<8x32xf32>
    %182 = arith.addf %180, %181 : vector<8x32xf32>
    %cst_82 = arith.constant dense<0.000000e+00> : vector<32xf32>
    %183 = vector.multi_reduction <add>, %182, %cst_82 [0] : vector<8x32xf32> to vector<32xf32>
    %184 = vector.shape_cast %183 : vector<32xf32> to vector<1x32xf32>
    %cst_83 = arith.constant 1.250000e-01 : f32
    %185 = vector.broadcast %cst_83 : f32 to vector<1x32xf32>
    %186 = arith.mulf %184, %185 : vector<1x32xf32>
    %187 = arith.mulf %182, %182 : vector<8x32xf32>
    %cst_84 = arith.constant dense<0.000000e+00> : vector<32xf32>
    %188 = vector.multi_reduction <add>, %187, %cst_84 [0] : vector<8x32xf32> to vector<32xf32>
    %189 = vector.shape_cast %188 : vector<32xf32> to vector<1x32xf32>
    %cst_85 = arith.constant 1.250000e-01 : f32
    %190 = vector.broadcast %cst_85 : f32 to vector<1x32xf32>
    %191 = arith.mulf %189, %190 : vector<1x32xf32>
    %192 = arith.mulf %186, %186 : vector<1x32xf32>
    %193 = arith.subf %191, %192 : vector<1x32xf32>
    %194 = vector.broadcast %186 : vector<1x32xf32> to vector<8x32xf32>
    %195 = arith.subf %182, %194 : vector<8x32xf32>
    %cst_86 = arith.constant 9.99999974E-6 : f32
    %196 = vector.broadcast %cst_86 : f32 to vector<1x32xf32>
    %197 = arith.addf %193, %196 : vector<1x32xf32>
    %198 = math.rsqrt %197 : vector<1x32xf32>
    %199 = vector.broadcast %198 : vector<1x32xf32> to vector<8x32xf32>
    %200 = arith.mulf %195, %199 : vector<8x32xf32>
    %201 = vector.broadcast %19 : vector<1x32xf32> to vector<8x32xf32>
    %202 = arith.mulf %200, %201 : vector<8x32xf32>
    %203 = vector.broadcast %18 : vector<1x32xf32> to vector<8x32xf32>
    %204 = arith.addf %202, %203 : vector<8x32xf32>
    %205 = vector.extract_strided_slice %204 {offsets = [0, 0], sizes = [8, 16], strides = [1, 1]} : vector<8x32xf32> to vector<8x16xf32>
    %206 = vector.extract_strided_slice %204 {offsets = [0, 16], sizes = [8, 16], strides = [1, 1]} : vector<8x32xf32> to vector<8x16xf32>
    %207 = arith.negf %206 : vector<8x16xf32>
    %208 = math.exp %207 : vector<8x16xf32>
    %cst_87 = arith.constant 1.000000e+00 : f32
    %209 = vector.broadcast %cst_87 : f32 to vector<8x16xf32>
    %210 = arith.addf %209, %208 : vector<8x16xf32>
    %211 = arith.divf %209, %210 : vector<8x16xf32>
    %212 = arith.mulf %205, %211 : vector<8x16xf32>
    %213 = arith.addf %179, %212 : vector<8x16xf32>
    %cst_88 = arith.constant 0.707106769 : f32
    %214 = vector.broadcast %cst_88 : f32 to vector<8x16xf32>
    %215 = arith.mulf %213, %214 : vector<8x16xf32>
    %216 = vector.extract_strided_slice %215 {offsets = [0, 8], sizes = [8, 8], strides = [1, 1]} : vector<8x16xf32> to vector<8x8xf32>
    %cst_89 = arith.constant 0.000000e+00 : f32
    %217 = vector.broadcast %cst_89 : f32 to vector<8x8xf32>
    %cst_90 = arith.constant dense<0.000000e+00> : vector<8x16xf32>
    %218 = tpu.matmul %216, %0, %cst_90 {dimension_numbers = #tpu.dot_dimension_numbers<[1], [0], [0], [1], [0, 0, 1, 1], [], []>} : vector<8x8xf32>, vector<8x16xf32>, vector<8x16xf32> -> vector<8x16xf32>
    %219 = vector.broadcast %1 : vector<1x16xf32> to vector<8x16xf32>
    %220 = arith.addf %218, %219 : vector<8x16xf32>
    %cst_91 = arith.constant dense<0.000000e+00> : vector<16xf32>
    %221 = vector.multi_reduction <add>, %220, %cst_91 [0] : vector<8x16xf32> to vector<16xf32>
    %222 = vector.shape_cast %221 : vector<16xf32> to vector<1x16xf32>
    %cst_92 = arith.constant 1.250000e-01 : f32
    %223 = vector.broadcast %cst_92 : f32 to vector<1x16xf32>
    %224 = arith.mulf %222, %223 : vector<1x16xf32>
    %225 = arith.mulf %220, %220 : vector<8x16xf32>
    %cst_93 = arith.constant dense<0.000000e+00> : vector<16xf32>
    %226 = vector.multi_reduction <add>, %225, %cst_93 [0] : vector<8x16xf32> to vector<16xf32>
    %227 = vector.shape_cast %226 : vector<16xf32> to vector<1x16xf32>
    %cst_94 = arith.constant 1.250000e-01 : f32
    %228 = vector.broadcast %cst_94 : f32 to vector<1x16xf32>
    %229 = arith.mulf %227, %228 : vector<1x16xf32>
    %230 = arith.mulf %224, %224 : vector<1x16xf32>
    %231 = arith.subf %229, %230 : vector<1x16xf32>
    %232 = vector.broadcast %224 : vector<1x16xf32> to vector<8x16xf32>
    %233 = arith.subf %220, %232 : vector<8x16xf32>
    %cst_95 = arith.constant 9.99999974E-6 : f32
    %234 = vector.broadcast %cst_95 : f32 to vector<1x16xf32>
    %235 = arith.addf %231, %234 : vector<1x16xf32>
    %236 = math.rsqrt %235 : vector<1x16xf32>
    %237 = vector.broadcast %236 : vector<1x16xf32> to vector<8x16xf32>
    %238 = arith.mulf %233, %237 : vector<8x16xf32>
    %239 = vector.broadcast %3 : vector<1x16xf32> to vector<8x16xf32>
    %240 = arith.mulf %238, %239 : vector<8x16xf32>
    %241 = vector.broadcast %2 : vector<1x16xf32> to vector<8x16xf32>
    %242 = arith.addf %240, %241 : vector<8x16xf32>
    %243 = arith.negf %242 : vector<8x16xf32>
    %244 = math.exp %243 : vector<8x16xf32>
    %cst_96 = arith.constant 1.000000e+00 : f32
    %245 = vector.broadcast %cst_96 : f32 to vector<8x16xf32>
    %246 = arith.addf %245, %244 : vector<8x16xf32>
    %247 = arith.divf %245, %246 : vector<8x16xf32>
    %cst_97 = arith.constant 0.000000e+00 : f32
    %248 = vector.broadcast %cst_97 : f32 to vector<8x16xf32>
    %249 = arith.subf %248, %247 : vector<8x16xf32>
    %cst_98 = arith.constant 1.000000e-10 : f32
    %250 = vector.broadcast %cst_98 : f32 to vector<8x16xf32>
    %251 = arith.addf %247, %250 : vector<8x16xf32>
    %252 = math.log %251 : vector<8x16xf32>
    %253 = arith.mulf %249, %252 : vector<8x16xf32>
    %254 = vector.shape_cast %253 : vector<8x16xf32> to vector<1x8x16xf32>
    %cst_99 = arith.constant dense<0.000000e+00> : vector<1xf32>
    %255 = vector.multi_reduction <add>, %254, %cst_99 [1, 2] : vector<1x8x16xf32> to vector<1xf32>
    %256 = vector.shape_cast %255 : vector<1xf32> to vector<1x1x1xf32>
    %257 = vector.extract %256[0, 0, 0] : f32 from vector<1x1x1xf32>
    %cst_100 = arith.constant 1.280000e+02 : f32
    %258 = arith.divf %257, %cst_100 : f32
    %cst_101 = arith.constant 0.000000e+00 : f32
    %259 = arith.addf %cst_101, %258 : f32
    %260 = arith.mulf %74, %247 : vector<8x16xf32>
    %cst_102 = arith.constant dense<0.000000e+00> : vector<8x32xf32>
    %261 = tpu.matmul %260, %48, %cst_102 {dimension_numbers = #tpu.dot_dimension_numbers<[1], [0], [0], [1], [0, 0, 1, 1], [], []>} : vector<8x16xf32>, vector<16x32xf32>, vector<8x32xf32> -> vector<8x32xf32>
    %262 = vector.broadcast %49 : vector<1x32xf32> to vector<8x32xf32>
    %263 = arith.addf %261, %262 : vector<8x32xf32>
    %cst_103 = arith.constant dense<0.000000e+00> : vector<32xf32>
    %264 = vector.multi_reduction <add>, %263, %cst_103 [0] : vector<8x32xf32> to vector<32xf32>
    %265 = vector.shape_cast %264 : vector<32xf32> to vector<1x32xf32>
    %cst_104 = arith.constant 1.250000e-01 : f32
    %266 = vector.broadcast %cst_104 : f32 to vector<1x32xf32>
    %267 = arith.mulf %265, %266 : vector<1x32xf32>
    %268 = arith.mulf %263, %263 : vector<8x32xf32>
    %cst_105 = arith.constant dense<0.000000e+00> : vector<32xf32>
    %269 = vector.multi_reduction <add>, %268, %cst_105 [0] : vector<8x32xf32> to vector<32xf32>
    %270 = vector.shape_cast %269 : vector<32xf32> to vector<1x32xf32>
    %cst_106 = arith.constant 1.250000e-01 : f32
    %271 = vector.broadcast %cst_106 : f32 to vector<1x32xf32>
    %272 = arith.mulf %270, %271 : vector<1x32xf32>
    %273 = arith.mulf %267, %267 : vector<1x32xf32>
    %274 = arith.subf %272, %273 : vector<1x32xf32>
    %275 = vector.broadcast %267 : vector<1x32xf32> to vector<8x32xf32>
    %276 = arith.subf %263, %275 : vector<8x32xf32>
    %cst_107 = arith.constant 9.99999974E-6 : f32
    %277 = vector.broadcast %cst_107 : f32 to vector<1x32xf32>
    %278 = arith.addf %274, %277 : vector<1x32xf32>
    %279 = math.rsqrt %278 : vector<1x32xf32>
    %280 = vector.broadcast %279 : vector<1x32xf32> to vector<8x32xf32>
    %281 = arith.mulf %276, %280 : vector<8x32xf32>
    %282 = vector.broadcast %33 : vector<1x32xf32> to vector<8x32xf32>
    %283 = arith.mulf %281, %282 : vector<8x32xf32>
    %284 = vector.broadcast %32 : vector<1x32xf32> to vector<8x32xf32>
    %285 = arith.addf %283, %284 : vector<8x32xf32>
    %286 = vector.extract_strided_slice %285 {offsets = [0, 0], sizes = [8, 16], strides = [1, 1]} : vector<8x32xf32> to vector<8x16xf32>
    %287 = vector.extract_strided_slice %285 {offsets = [0, 16], sizes = [8, 16], strides = [1, 1]} : vector<8x32xf32> to vector<8x16xf32>
    %288 = arith.negf %287 : vector<8x16xf32>
    %289 = math.exp %288 : vector<8x16xf32>
    %cst_108 = arith.constant 1.000000e+00 : f32
    %290 = vector.broadcast %cst_108 : f32 to vector<8x16xf32>
    %291 = arith.addf %290, %289 : vector<8x16xf32>
    %292 = arith.divf %290, %291 : vector<8x16xf32>
    %293 = arith.mulf %286, %292 : vector<8x16xf32>
    %cst_109 = arith.constant dense<0.000000e+00> : vector<8x32xf32>
    %294 = tpu.matmul %293, %50, %cst_109 {dimension_numbers = #tpu.dot_dimension_numbers<[1], [0], [0], [1], [0, 0, 1, 1], [], []>} : vector<8x16xf32>, vector<16x32xf32>, vector<8x32xf32> -> vector<8x32xf32>
    %295 = vector.broadcast %51 : vector<1x32xf32> to vector<8x32xf32>
    %296 = arith.addf %294, %295 : vector<8x32xf32>
    %cst_110 = arith.constant dense<0.000000e+00> : vector<32xf32>
    %297 = vector.multi_reduction <add>, %296, %cst_110 [0] : vector<8x32xf32> to vector<32xf32>
    %298 = vector.shape_cast %297 : vector<32xf32> to vector<1x32xf32>
    %cst_111 = arith.constant 1.250000e-01 : f32
    %299 = vector.broadcast %cst_111 : f32 to vector<1x32xf32>
    %300 = arith.mulf %298, %299 : vector<1x32xf32>
    %301 = arith.mulf %296, %296 : vector<8x32xf32>
    %cst_112 = arith.constant dense<0.000000e+00> : vector<32xf32>
    %302 = vector.multi_reduction <add>, %301, %cst_112 [0] : vector<8x32xf32> to vector<32xf32>
    %303 = vector.shape_cast %302 : vector<32xf32> to vector<1x32xf32>
    %cst_113 = arith.constant 1.250000e-01 : f32
    %304 = vector.broadcast %cst_113 : f32 to vector<1x32xf32>
    %305 = arith.mulf %303, %304 : vector<1x32xf32>
    %306 = arith.mulf %300, %300 : vector<1x32xf32>
    %307 = arith.subf %305, %306 : vector<1x32xf32>
    %308 = vector.broadcast %300 : vector<1x32xf32> to vector<8x32xf32>
    %309 = arith.subf %296, %308 : vector<8x32xf32>
    %cst_114 = arith.constant 9.99999974E-6 : f32
    %310 = vector.broadcast %cst_114 : f32 to vector<1x32xf32>
    %311 = arith.addf %307, %310 : vector<1x32xf32>
    %312 = math.rsqrt %311 : vector<1x32xf32>
    %313 = vector.broadcast %312 : vector<1x32xf32> to vector<8x32xf32>
    %314 = arith.mulf %309, %313 : vector<8x32xf32>
    %315 = vector.broadcast %35 : vector<1x32xf32> to vector<8x32xf32>
    %316 = arith.mulf %314, %315 : vector<8x32xf32>
    %317 = vector.broadcast %34 : vector<1x32xf32> to vector<8x32xf32>
    %318 = arith.addf %316, %317 : vector<8x32xf32>
    %319 = vector.extract_strided_slice %318 {offsets = [0, 0], sizes = [8, 16], strides = [1, 1]} : vector<8x32xf32> to vector<8x16xf32>
    %320 = vector.extract_strided_slice %318 {offsets = [0, 16], sizes = [8, 16], strides = [1, 1]} : vector<8x32xf32> to vector<8x16xf32>
    %321 = arith.negf %320 : vector<8x16xf32>
    %322 = math.exp %321 : vector<8x16xf32>
    %cst_115 = arith.constant 1.000000e+00 : f32
    %323 = vector.broadcast %cst_115 : f32 to vector<8x16xf32>
    %324 = arith.addf %323, %322 : vector<8x16xf32>
    %325 = arith.divf %323, %324 : vector<8x16xf32>
    %326 = arith.mulf %319, %325 : vector<8x16xf32>
    %327 = arith.addf %293, %326 : vector<8x16xf32>
    %cst_116 = arith.constant 0.707106769 : f32
    %328 = vector.broadcast %cst_116 : f32 to vector<8x16xf32>
    %329 = arith.mulf %327, %328 : vector<8x16xf32>
    %cst_117 = arith.constant dense<0.000000e+00> : vector<8x32xf32>
    %330 = tpu.matmul %329, %24, %cst_117 {dimension_numbers = #tpu.dot_dimension_numbers<[1], [0], [0], [1], [0, 0, 1, 1], [], []>} : vector<8x16xf32>, vector<16x32xf32>, vector<8x32xf32> -> vector<8x32xf32>
    %331 = vector.broadcast %25 : vector<1x32xf32> to vector<8x32xf32>
    %332 = arith.addf %330, %331 : vector<8x32xf32>
    %cst_118 = arith.constant dense<0.000000e+00> : vector<32xf32>
    %333 = vector.multi_reduction <add>, %332, %cst_118 [0] : vector<8x32xf32> to vector<32xf32>
    %334 = vector.shape_cast %333 : vector<32xf32> to vector<1x32xf32>
    %cst_119 = arith.constant 1.250000e-01 : f32
    %335 = vector.broadcast %cst_119 : f32 to vector<1x32xf32>
    %336 = arith.mulf %334, %335 : vector<1x32xf32>
    %337 = arith.mulf %332, %332 : vector<8x32xf32>
    %cst_120 = arith.constant dense<0.000000e+00> : vector<32xf32>
    %338 = vector.multi_reduction <add>, %337, %cst_120 [0] : vector<8x32xf32> to vector<32xf32>
    %339 = vector.shape_cast %338 : vector<32xf32> to vector<1x32xf32>
    %cst_121 = arith.constant 1.250000e-01 : f32
    %340 = vector.broadcast %cst_121 : f32 to vector<1x32xf32>
    %341 = arith.mulf %339, %340 : vector<1x32xf32>
    %342 = arith.mulf %336, %336 : vector<1x32xf32>
    %343 = arith.subf %341, %342 : vector<1x32xf32>
    %344 = vector.broadcast %336 : vector<1x32xf32> to vector<8x32xf32>
    %345 = arith.subf %332, %344 : vector<8x32xf32>
    %cst_122 = arith.constant 9.99999974E-6 : f32
    %346 = vector.broadcast %cst_122 : f32 to vector<1x32xf32>
    %347 = arith.addf %343, %346 : vector<1x32xf32>
    %348 = math.rsqrt %347 : vector<1x32xf32>
    %349 = vector.broadcast %348 : vector<1x32xf32> to vector<8x32xf32>
    %350 = arith.mulf %345, %349 : vector<8x32xf32>
    %351 = vector.broadcast %27 : vector<1x32xf32> to vector<8x32xf32>
    %352 = arith.mulf %350, %351 : vector<8x32xf32>
    %353 = vector.broadcast %26 : vector<1x32xf32> to vector<8x32xf32>
    %354 = arith.addf %352, %353 : vector<8x32xf32>
    %355 = vector.extract_strided_slice %354 {offsets = [0, 0], sizes = [8, 16], strides = [1, 1]} : vector<8x32xf32> to vector<8x16xf32>
    %356 = vector.extract_strided_slice %354 {offsets = [0, 16], sizes = [8, 16], strides = [1, 1]} : vector<8x32xf32> to vector<8x16xf32>
    %357 = arith.negf %356 : vector<8x16xf32>
    %358 = math.exp %357 : vector<8x16xf32>
    %cst_123 = arith.constant 1.000000e+00 : f32
    %359 = vector.broadcast %cst_123 : f32 to vector<8x16xf32>
    %360 = arith.addf %359, %358 : vector<8x16xf32>
    %361 = arith.divf %359, %360 : vector<8x16xf32>
    %362 = arith.mulf %355, %361 : vector<8x16xf32>
    %363 = arith.addf %329, %362 : vector<8x16xf32>
    %cst_124 = arith.constant 0.707106769 : f32
    %364 = vector.broadcast %cst_124 : f32 to vector<8x16xf32>
    %365 = arith.mulf %363, %364 : vector<8x16xf32>
    %cst_125 = arith.constant dense<0.000000e+00> : vector<8x32xf32>
    %366 = tpu.matmul %365, %28, %cst_125 {dimension_numbers = #tpu.dot_dimension_numbers<[1], [0], [0], [1], [0, 0, 1, 1], [], []>} : vector<8x16xf32>, vector<16x32xf32>, vector<8x32xf32> -> vector<8x32xf32>
    %367 = vector.broadcast %29 : vector<1x32xf32> to vector<8x32xf32>
    %368 = arith.addf %366, %367 : vector<8x32xf32>
    %cst_126 = arith.constant dense<0.000000e+00> : vector<32xf32>
    %369 = vector.multi_reduction <add>, %368, %cst_126 [0] : vector<8x32xf32> to vector<32xf32>
    %370 = vector.shape_cast %369 : vector<32xf32> to vector<1x32xf32>
    %cst_127 = arith.constant 1.250000e-01 : f32
    %371 = vector.broadcast %cst_127 : f32 to vector<1x32xf32>
    %372 = arith.mulf %370, %371 : vector<1x32xf32>
    %373 = arith.mulf %368, %368 : vector<8x32xf32>
    %cst_128 = arith.constant dense<0.000000e+00> : vector<32xf32>
    %374 = vector.multi_reduction <add>, %373, %cst_128 [0] : vector<8x32xf32> to vector<32xf32>
    %375 = vector.shape_cast %374 : vector<32xf32> to vector<1x32xf32>
    %cst_129 = arith.constant 1.250000e-01 : f32
    %376 = vector.broadcast %cst_129 : f32 to vector<1x32xf32>
    %377 = arith.mulf %375, %376 : vector<1x32xf32>
    %378 = arith.mulf %372, %372 : vector<1x32xf32>
    %379 = arith.subf %377, %378 : vector<1x32xf32>
    %380 = vector.broadcast %372 : vector<1x32xf32> to vector<8x32xf32>
    %381 = arith.subf %368, %380 : vector<8x32xf32>
    %cst_130 = arith.constant 9.99999974E-6 : f32
    %382 = vector.broadcast %cst_130 : f32 to vector<1x32xf32>
    %383 = arith.addf %379, %382 : vector<1x32xf32>
    %384 = math.rsqrt %383 : vector<1x32xf32>
    %385 = vector.broadcast %384 : vector<1x32xf32> to vector<8x32xf32>
    %386 = arith.mulf %381, %385 : vector<8x32xf32>
    %387 = vector.broadcast %31 : vector<1x32xf32> to vector<8x32xf32>
    %388 = arith.mulf %386, %387 : vector<8x32xf32>
    %389 = vector.broadcast %30 : vector<1x32xf32> to vector<8x32xf32>
    %390 = arith.addf %388, %389 : vector<8x32xf32>
    %391 = vector.extract_strided_slice %390 {offsets = [0, 0], sizes = [8, 16], strides = [1, 1]} : vector<8x32xf32> to vector<8x16xf32>
    %392 = vector.extract_strided_slice %390 {offsets = [0, 16], sizes = [8, 16], strides = [1, 1]} : vector<8x32xf32> to vector<8x16xf32>
    %393 = arith.negf %392 : vector<8x16xf32>
    %394 = math.exp %393 : vector<8x16xf32>
    %cst_131 = arith.constant 1.000000e+00 : f32
    %395 = vector.broadcast %cst_131 : f32 to vector<8x16xf32>
    %396 = arith.addf %395, %394 : vector<8x16xf32>
    %397 = arith.divf %395, %396 : vector<8x16xf32>
    %398 = arith.mulf %391, %397 : vector<8x16xf32>
    %399 = arith.addf %365, %398 : vector<8x16xf32>
    %cst_132 = arith.constant 0.707106769 : f32
    %400 = vector.broadcast %cst_132 : f32 to vector<8x16xf32>
    %401 = arith.mulf %399, %400 : vector<8x16xf32>
    %402 = vector.extract_strided_slice %401 {offsets = [0, 0], sizes = [8, 8], strides = [1, 1]} : vector<8x16xf32> to vector<8x8xf32>
    %cst_133 = arith.constant 0.000000e+00 : f32
    %403 = vector.broadcast %cst_133 : f32 to vector<8x8xf32>
    %404 = arith.maximumf %402, %403 : vector<8x8xf32>
    %405 = arith.addf %217, %404 : vector<8x8xf32>
    %406 = vector.extract_strided_slice %401 {offsets = [0, 8], sizes = [8, 8], strides = [1, 1]} : vector<8x16xf32> to vector<8x8xf32>
    %cst_134 = arith.constant dense<0.000000e+00> : vector<8x16xf32>
    %407 = tpu.matmul %406, %4, %cst_134 {dimension_numbers = #tpu.dot_dimension_numbers<[1], [0], [0], [1], [0, 0, 1, 1], [], []>} : vector<8x8xf32>, vector<8x16xf32>, vector<8x16xf32> -> vector<8x16xf32>
    %408 = vector.broadcast %5 : vector<1x16xf32> to vector<8x16xf32>
    %409 = arith.addf %407, %408 : vector<8x16xf32>
    %cst_135 = arith.constant dense<0.000000e+00> : vector<16xf32>
    %410 = vector.multi_reduction <add>, %409, %cst_135 [0] : vector<8x16xf32> to vector<16xf32>
    %411 = vector.shape_cast %410 : vector<16xf32> to vector<1x16xf32>
    %cst_136 = arith.constant 1.250000e-01 : f32
    %412 = vector.broadcast %cst_136 : f32 to vector<1x16xf32>
    %413 = arith.mulf %411, %412 : vector<1x16xf32>
    %414 = arith.mulf %409, %409 : vector<8x16xf32>
    %cst_137 = arith.constant dense<0.000000e+00> : vector<16xf32>
    %415 = vector.multi_reduction <add>, %414, %cst_137 [0] : vector<8x16xf32> to vector<16xf32>
    %416 = vector.shape_cast %415 : vector<16xf32> to vector<1x16xf32>
    %cst_138 = arith.constant 1.250000e-01 : f32
    %417 = vector.broadcast %cst_138 : f32 to vector<1x16xf32>
    %418 = arith.mulf %416, %417 : vector<1x16xf32>
    %419 = arith.mulf %413, %413 : vector<1x16xf32>
    %420 = arith.subf %418, %419 : vector<1x16xf32>
    %421 = vector.broadcast %413 : vector<1x16xf32> to vector<8x16xf32>
    %422 = arith.subf %409, %421 : vector<8x16xf32>
    %cst_139 = arith.constant 9.99999974E-6 : f32
    %423 = vector.broadcast %cst_139 : f32 to vector<1x16xf32>
    %424 = arith.addf %420, %423 : vector<1x16xf32>
    %425 = math.rsqrt %424 : vector<1x16xf32>
    %426 = vector.broadcast %425 : vector<1x16xf32> to vector<8x16xf32>
    %427 = arith.mulf %422, %426 : vector<8x16xf32>
    %428 = vector.broadcast %7 : vector<1x16xf32> to vector<8x16xf32>
    %429 = arith.mulf %427, %428 : vector<8x16xf32>
    %430 = vector.broadcast %6 : vector<1x16xf32> to vector<8x16xf32>
    %431 = arith.addf %429, %430 : vector<8x16xf32>
    %432 = arith.negf %431 : vector<8x16xf32>
    %433 = math.exp %432 : vector<8x16xf32>
    %cst_140 = arith.constant 1.000000e+00 : f32
    %434 = vector.broadcast %cst_140 : f32 to vector<8x16xf32>
    %435 = arith.addf %434, %433 : vector<8x16xf32>
    %436 = arith.divf %434, %435 : vector<8x16xf32>
    %cst_141 = arith.constant 0.000000e+00 : f32
    %437 = vector.broadcast %cst_141 : f32 to vector<8x16xf32>
    %438 = arith.subf %437, %436 : vector<8x16xf32>
    %cst_142 = arith.constant 1.000000e-10 : f32
    %439 = vector.broadcast %cst_142 : f32 to vector<8x16xf32>
    %440 = arith.addf %436, %439 : vector<8x16xf32>
    %441 = math.log %440 : vector<8x16xf32>
    %442 = arith.mulf %438, %441 : vector<8x16xf32>
    %443 = vector.shape_cast %442 : vector<8x16xf32> to vector<1x8x16xf32>
    %cst_143 = arith.constant dense<0.000000e+00> : vector<1xf32>
    %444 = vector.multi_reduction <add>, %443, %cst_143 [1, 2] : vector<1x8x16xf32> to vector<1xf32>
    %445 = vector.shape_cast %444 : vector<1xf32> to vector<1x1x1xf32>
    %446 = vector.extract %445[0, 0, 0] : f32 from vector<1x1x1xf32>
    %cst_144 = arith.constant 1.280000e+02 : f32
    %447 = arith.divf %446, %cst_144 : f32
    %448 = arith.addf %259, %447 : f32
    %449 = arith.mulf %74, %436 : vector<8x16xf32>
    %cst_145 = arith.constant dense<0.000000e+00> : vector<8x32xf32>
    %450 = tpu.matmul %449, %48, %cst_145 {dimension_numbers = #tpu.dot_dimension_numbers<[1], [0], [0], [1], [0, 0, 1, 1], [], []>} : vector<8x16xf32>, vector<16x32xf32>, vector<8x32xf32> -> vector<8x32xf32>
    %451 = vector.broadcast %49 : vector<1x32xf32> to vector<8x32xf32>
    %452 = arith.addf %450, %451 : vector<8x32xf32>
    %cst_146 = arith.constant dense<0.000000e+00> : vector<32xf32>
    %453 = vector.multi_reduction <add>, %452, %cst_146 [0] : vector<8x32xf32> to vector<32xf32>
    %454 = vector.shape_cast %453 : vector<32xf32> to vector<1x32xf32>
    %cst_147 = arith.constant 1.250000e-01 : f32
    %455 = vector.broadcast %cst_147 : f32 to vector<1x32xf32>
    %456 = arith.mulf %454, %455 : vector<1x32xf32>
    %457 = arith.mulf %452, %452 : vector<8x32xf32>
    %cst_148 = arith.constant dense<0.000000e+00> : vector<32xf32>
    %458 = vector.multi_reduction <add>, %457, %cst_148 [0] : vector<8x32xf32> to vector<32xf32>
    %459 = vector.shape_cast %458 : vector<32xf32> to vector<1x32xf32>
    %cst_149 = arith.constant 1.250000e-01 : f32
    %460 = vector.broadcast %cst_149 : f32 to vector<1x32xf32>
    %461 = arith.mulf %459, %460 : vector<1x32xf32>
    %462 = arith.mulf %456, %456 : vector<1x32xf32>
    %463 = arith.subf %461, %462 : vector<1x32xf32>
    %464 = vector.broadcast %456 : vector<1x32xf32> to vector<8x32xf32>
    %465 = arith.subf %452, %464 : vector<8x32xf32>
    %cst_150 = arith.constant 9.99999974E-6 : f32
    %466 = vector.broadcast %cst_150 : f32 to vector<1x32xf32>
    %467 = arith.addf %463, %466 : vector<1x32xf32>
    %468 = math.rsqrt %467 : vector<1x32xf32>
    %469 = vector.broadcast %468 : vector<1x32xf32> to vector<8x32xf32>
    %470 = arith.mulf %465, %469 : vector<8x32xf32>
    %471 = vector.broadcast %45 : vector<1x32xf32> to vector<8x32xf32>
    %472 = arith.mulf %470, %471 : vector<8x32xf32>
    %473 = vector.broadcast %44 : vector<1x32xf32> to vector<8x32xf32>
    %474 = arith.addf %472, %473 : vector<8x32xf32>
    %475 = vector.extract_strided_slice %474 {offsets = [0, 0], sizes = [8, 16], strides = [1, 1]} : vector<8x32xf32> to vector<8x16xf32>
    %476 = vector.extract_strided_slice %474 {offsets = [0, 16], sizes = [8, 16], strides = [1, 1]} : vector<8x32xf32> to vector<8x16xf32>
    %477 = arith.negf %476 : vector<8x16xf32>
    %478 = math.exp %477 : vector<8x16xf32>
    %cst_151 = arith.constant 1.000000e+00 : f32
    %479 = vector.broadcast %cst_151 : f32 to vector<8x16xf32>
    %480 = arith.addf %479, %478 : vector<8x16xf32>
    %481 = arith.divf %479, %480 : vector<8x16xf32>
    %482 = arith.mulf %475, %481 : vector<8x16xf32>
    %cst_152 = arith.constant dense<0.000000e+00> : vector<8x32xf32>
    %483 = tpu.matmul %482, %50, %cst_152 {dimension_numbers = #tpu.dot_dimension_numbers<[1], [0], [0], [1], [0, 0, 1, 1], [], []>} : vector<8x16xf32>, vector<16x32xf32>, vector<8x32xf32> -> vector<8x32xf32>
    %484 = vector.broadcast %51 : vector<1x32xf32> to vector<8x32xf32>
    %485 = arith.addf %483, %484 : vector<8x32xf32>
    %cst_153 = arith.constant dense<0.000000e+00> : vector<32xf32>
    %486 = vector.multi_reduction <add>, %485, %cst_153 [0] : vector<8x32xf32> to vector<32xf32>
    %487 = vector.shape_cast %486 : vector<32xf32> to vector<1x32xf32>
    %cst_154 = arith.constant 1.250000e-01 : f32
    %488 = vector.broadcast %cst_154 : f32 to vector<1x32xf32>
    %489 = arith.mulf %487, %488 : vector<1x32xf32>
    %490 = arith.mulf %485, %485 : vector<8x32xf32>
    %cst_155 = arith.constant dense<0.000000e+00> : vector<32xf32>
    %491 = vector.multi_reduction <add>, %490, %cst_155 [0] : vector<8x32xf32> to vector<32xf32>
    %492 = vector.shape_cast %491 : vector<32xf32> to vector<1x32xf32>
    %cst_156 = arith.constant 1.250000e-01 : f32
    %493 = vector.broadcast %cst_156 : f32 to vector<1x32xf32>
    %494 = arith.mulf %492, %493 : vector<1x32xf32>
    %495 = arith.mulf %489, %489 : vector<1x32xf32>
    %496 = arith.subf %494, %495 : vector<1x32xf32>
    %497 = vector.broadcast %489 : vector<1x32xf32> to vector<8x32xf32>
    %498 = arith.subf %485, %497 : vector<8x32xf32>
    %cst_157 = arith.constant 9.99999974E-6 : f32
    %499 = vector.broadcast %cst_157 : f32 to vector<1x32xf32>
    %500 = arith.addf %496, %499 : vector<1x32xf32>
    %501 = math.rsqrt %500 : vector<1x32xf32>
    %502 = vector.broadcast %501 : vector<1x32xf32> to vector<8x32xf32>
    %503 = arith.mulf %498, %502 : vector<8x32xf32>
    %504 = vector.broadcast %47 : vector<1x32xf32> to vector<8x32xf32>
    %505 = arith.mulf %503, %504 : vector<8x32xf32>
    %506 = vector.broadcast %46 : vector<1x32xf32> to vector<8x32xf32>
    %507 = arith.addf %505, %506 : vector<8x32xf32>
    %508 = vector.extract_strided_slice %507 {offsets = [0, 0], sizes = [8, 16], strides = [1, 1]} : vector<8x32xf32> to vector<8x16xf32>
    %509 = vector.extract_strided_slice %507 {offsets = [0, 16], sizes = [8, 16], strides = [1, 1]} : vector<8x32xf32> to vector<8x16xf32>
    %510 = arith.negf %509 : vector<8x16xf32>
    %511 = math.exp %510 : vector<8x16xf32>
    %cst_158 = arith.constant 1.000000e+00 : f32
    %512 = vector.broadcast %cst_158 : f32 to vector<8x16xf32>
    %513 = arith.addf %512, %511 : vector<8x16xf32>
    %514 = arith.divf %512, %513 : vector<8x16xf32>
    %515 = arith.mulf %508, %514 : vector<8x16xf32>
    %516 = arith.addf %482, %515 : vector<8x16xf32>
    %cst_159 = arith.constant 0.707106769 : f32
    %517 = vector.broadcast %cst_159 : f32 to vector<8x16xf32>
    %518 = arith.mulf %516, %517 : vector<8x16xf32>
    %cst_160 = arith.constant dense<0.000000e+00> : vector<8x32xf32>
    %519 = tpu.matmul %518, %36, %cst_160 {dimension_numbers = #tpu.dot_dimension_numbers<[1], [0], [0], [1], [0, 0, 1, 1], [], []>} : vector<8x16xf32>, vector<16x32xf32>, vector<8x32xf32> -> vector<8x32xf32>
    %520 = vector.broadcast %37 : vector<1x32xf32> to vector<8x32xf32>
    %521 = arith.addf %519, %520 : vector<8x32xf32>
    %cst_161 = arith.constant dense<0.000000e+00> : vector<32xf32>
    %522 = vector.multi_reduction <add>, %521, %cst_161 [0] : vector<8x32xf32> to vector<32xf32>
    %523 = vector.shape_cast %522 : vector<32xf32> to vector<1x32xf32>
    %cst_162 = arith.constant 1.250000e-01 : f32
    %524 = vector.broadcast %cst_162 : f32 to vector<1x32xf32>
    %525 = arith.mulf %523, %524 : vector<1x32xf32>
    %526 = arith.mulf %521, %521 : vector<8x32xf32>
    %cst_163 = arith.constant dense<0.000000e+00> : vector<32xf32>
    %527 = vector.multi_reduction <add>, %526, %cst_163 [0] : vector<8x32xf32> to vector<32xf32>
    %528 = vector.shape_cast %527 : vector<32xf32> to vector<1x32xf32>
    %cst_164 = arith.constant 1.250000e-01 : f32
    %529 = vector.broadcast %cst_164 : f32 to vector<1x32xf32>
    %530 = arith.mulf %528, %529 : vector<1x32xf32>
    %531 = arith.mulf %525, %525 : vector<1x32xf32>
    %532 = arith.subf %530, %531 : vector<1x32xf32>
    %533 = vector.broadcast %525 : vector<1x32xf32> to vector<8x32xf32>
    %534 = arith.subf %521, %533 : vector<8x32xf32>
    %cst_165 = arith.constant 9.99999974E-6 : f32
    %535 = vector.broadcast %cst_165 : f32 to vector<1x32xf32>
    %536 = arith.addf %532, %535 : vector<1x32xf32>
    %537 = math.rsqrt %536 : vector<1x32xf32>
    %538 = vector.broadcast %537 : vector<1x32xf32> to vector<8x32xf32>
    %539 = arith.mulf %534, %538 : vector<8x32xf32>
    %540 = vector.broadcast %39 : vector<1x32xf32> to vector<8x32xf32>
    %541 = arith.mulf %539, %540 : vector<8x32xf32>
    %542 = vector.broadcast %38 : vector<1x32xf32> to vector<8x32xf32>
    %543 = arith.addf %541, %542 : vector<8x32xf32>
    %544 = vector.extract_strided_slice %543 {offsets = [0, 0], sizes = [8, 16], strides = [1, 1]} : vector<8x32xf32> to vector<8x16xf32>
    %545 = vector.extract_strided_slice %543 {offsets = [0, 16], sizes = [8, 16], strides = [1, 1]} : vector<8x32xf32> to vector<8x16xf32>
    %546 = arith.negf %545 : vector<8x16xf32>
    %547 = math.exp %546 : vector<8x16xf32>
    %cst_166 = arith.constant 1.000000e+00 : f32
    %548 = vector.broadcast %cst_166 : f32 to vector<8x16xf32>
    %549 = arith.addf %548, %547 : vector<8x16xf32>
    %550 = arith.divf %548, %549 : vector<8x16xf32>
    %551 = arith.mulf %544, %550 : vector<8x16xf32>
    %552 = arith.addf %518, %551 : vector<8x16xf32>
    %cst_167 = arith.constant 0.707106769 : f32
    %553 = vector.broadcast %cst_167 : f32 to vector<8x16xf32>
    %554 = arith.mulf %552, %553 : vector<8x16xf32>
    %cst_168 = arith.constant dense<0.000000e+00> : vector<8x32xf32>
    %555 = tpu.matmul %554, %40, %cst_168 {dimension_numbers = #tpu.dot_dimension_numbers<[1], [0], [0], [1], [0, 0, 1, 1], [], []>} : vector<8x16xf32>, vector<16x32xf32>, vector<8x32xf32> -> vector<8x32xf32>
    %556 = vector.broadcast %41 : vector<1x32xf32> to vector<8x32xf32>
    %557 = arith.addf %555, %556 : vector<8x32xf32>
    %cst_169 = arith.constant dense<0.000000e+00> : vector<32xf32>
    %558 = vector.multi_reduction <add>, %557, %cst_169 [0] : vector<8x32xf32> to vector<32xf32>
    %559 = vector.shape_cast %558 : vector<32xf32> to vector<1x32xf32>
    %cst_170 = arith.constant 1.250000e-01 : f32
    %560 = vector.broadcast %cst_170 : f32 to vector<1x32xf32>
    %561 = arith.mulf %559, %560 : vector<1x32xf32>
    %562 = arith.mulf %557, %557 : vector<8x32xf32>
    %cst_171 = arith.constant dense<0.000000e+00> : vector<32xf32>
    %563 = vector.multi_reduction <add>, %562, %cst_171 [0] : vector<8x32xf32> to vector<32xf32>
    %564 = vector.shape_cast %563 : vector<32xf32> to vector<1x32xf32>
    %cst_172 = arith.constant 1.250000e-01 : f32
    %565 = vector.broadcast %cst_172 : f32 to vector<1x32xf32>
    %566 = arith.mulf %564, %565 : vector<1x32xf32>
    %567 = arith.mulf %561, %561 : vector<1x32xf32>
    %568 = arith.subf %566, %567 : vector<1x32xf32>
    %569 = vector.broadcast %561 : vector<1x32xf32> to vector<8x32xf32>
    %570 = arith.subf %557, %569 : vector<8x32xf32>
    %cst_173 = arith.constant 9.99999974E-6 : f32
    %571 = vector.broadcast %cst_173 : f32 to vector<1x32xf32>
    %572 = arith.addf %568, %571 : vector<1x32xf32>
    %573 = math.rsqrt %572 : vector<1x32xf32>
    %574 = vector.broadcast %573 : vector<1x32xf32> to vector<8x32xf32>
    %575 = arith.mulf %570, %574 : vector<8x32xf32>
    %576 = vector.broadcast %43 : vector<1x32xf32> to vector<8x32xf32>
    %577 = arith.mulf %575, %576 : vector<8x32xf32>
    %578 = vector.broadcast %42 : vector<1x32xf32> to vector<8x32xf32>
    %579 = arith.addf %577, %578 : vector<8x32xf32>
    %580 = vector.extract_strided_slice %579 {offsets = [0, 0], sizes = [8, 16], strides = [1, 1]} : vector<8x32xf32> to vector<8x16xf32>
    %581 = vector.extract_strided_slice %579 {offsets = [0, 16], sizes = [8, 16], strides = [1, 1]} : vector<8x32xf32> to vector<8x16xf32>
    %582 = arith.negf %581 : vector<8x16xf32>
    %583 = math.exp %582 : vector<8x16xf32>
    %cst_174 = arith.constant 1.000000e+00 : f32
    %584 = vector.broadcast %cst_174 : f32 to vector<8x16xf32>
    %585 = arith.addf %584, %583 : vector<8x16xf32>
    %586 = arith.divf %584, %585 : vector<8x16xf32>
    %587 = arith.mulf %580, %586 : vector<8x16xf32>
    %588 = arith.addf %554, %587 : vector<8x16xf32>
    %cst_175 = arith.constant 0.707106769 : f32
    %589 = vector.broadcast %cst_175 : f32 to vector<8x16xf32>
    %590 = arith.mulf %588, %589 : vector<8x16xf32>
    %591 = vector.extract_strided_slice %590 {offsets = [0, 0], sizes = [8, 8], strides = [1, 1]} : vector<8x16xf32> to vector<8x8xf32>
    %cst_176 = arith.constant 0.000000e+00 : f32
    %592 = vector.broadcast %cst_176 : f32 to vector<8x8xf32>
    %593 = arith.maximumf %591, %592 : vector<8x8xf32>
    %594 = arith.addf %405, %593 : vector<8x8xf32>
    %cst_177 = arith.constant dense<0.000000e+00> : vector<8x4xf32>
    %595 = tpu.matmul %594, %10, %cst_177 {dimension_numbers = #tpu.dot_dimension_numbers<[1], [0], [0], [1], [0, 0, 1, 1], [], []>} : vector<8x8xf32>, vector<8x4xf32>, vector<8x4xf32> -> vector<8x4xf32>
    %596 = vector.broadcast %11 : vector<1x4xf32> to vector<8x4xf32>
    %597 = arith.addf %595, %596 : vector<8x4xf32>
    %c0_178 = arith.constant 0 : index
    %c0_179 = arith.constant 0 : index
    %598 = vector.load %arg2[%c0_178, %c0_179] : memref<8x4xf32, #tpu.memory_space<vmem>>, vector<8x4xf32>
    tpu.vector_store %arg2[%c0_178, %c0_179], %597 {strides = array<i32>} : memref<8x4xf32, #tpu.memory_space<vmem>>, vector<8x4xf32>,
    %599 = vector.broadcast %448 : f32 to vector<1x1xf32>
    %c0_180 = arith.constant 0 : index
    %c0_181 = arith.constant 0 : index
    %600 = vector.load %arg3[%c0_180, %c0_181] : memref<1x1xf32, #tpu.memory_space<vmem>>, vector<1x1xf32>
    tpu.vector_store %arg3[%c0_180, %c0_181], %599 {strides = array<i32>} : memref<1x1xf32, #tpu.memory_space<vmem>>, vector<1x1xf32>,
    return
  }
}

</mosaic_0001>

<llo_original>
// kernel: tpu_custom_call.1
$region0: #{tpu_custom_call.1}
  #allocation0 [shape = 'u32[]', space=smem, size = 0x4, offset = 0x4, fixed_abs, tag = 'smem constant byte address 0x4 - core index']
  #allocation1 [shape = 'u32[144,128]{1,0:T(1,128)}', space=vmem, size = 0x12000, scoped, tag = 'internal scratch']
  %s0 = inlined_call_operand.hbm [shape: f32[8,16], index: 0, kind: input, shape index: {}]
  %s1 = inlined_call_operand.hbm [shape: f32[480,128], index: 1, kind: input, shape index: {}]
  %s2 = inlined_call_operand.vmem [shape: f32[8,4], index: 2, kind: output, shape index: {0}]
  %s3 = inlined_call_operand.hbm [shape: f32[1,1], index: 3, kind: output, shape index: {1}]
  %4 = xla_tuple %s2, %s3
  %s5 = sld [smem:[#allocation0]]
  $region34: #{tpu_custom_call.1} parent=0
    _
  %s7 = ssub.s32 1, %s5
  %s8 = scalar_select 0, %s7, %s5
  $region1: #{tpu_custom_call.1} parent=0
    #allocation2 [shape = 'u8[4096]{0}', space=vmem, size = 0x1000, scoped, tag = 'input window, operand 0, single buffered']
    #allocation3 [shape = 's32[1]{0}', space=sflag, size = 0x4, scoped, tag = 'scoped memory for tpu_custom_call.1']
    #allocation4 [shape = 's32[1]{0}', space=sflag, size = 0x4, scoped, tag = 'scoped memory for tpu_custom_call.1']
    #allocation5 [shape = 'u8[245760]{0}', space=vmem, size = 0x3c000, scoped, tag = 'input window, operand 1, single buffered']
    #allocation6 [shape = 's32[1]{0}', space=sflag, size = 0x4, scoped, tag = 'scoped memory for tpu_custom_call.1']
    #allocation7 [shape = 'u8[512]{0}', space=vmem, size = 0x400, scoped, tag = 'output window, operand 1, single buffered']
    %9 = vsyncpa [#allocation3], 0
    %10 = vsyncpa [#allocation6], 0
    %11 = vsyncpa [#allocation4], 0
    // Predicated region
    $region2: #{tpu_custom_call.1} parent=1 // pred_check
      _
    $region3: #{tpu_custom_call.1} parent=1 // pred_check_branch
      %13 = sbr.rel (0) target = $region5
    $region4: #{tpu_custom_call.1} parent=1 // pred_region
      %s15 = ssub.s32 128, 128
      %16 = vsyncadd [#allocation3], %s15
      %s18 = sshll.u32 [#allocation2], 4
      %s19 = int_to_ptr.vmem [resolvable:$true] %s18
      %21 = dma.hbm_to_vmem [thread:$0]  %s0, 128, %s19, [#allocation3]
    $region5: #{tpu_custom_call.1} parent=1 // pred_fallthru
      _
    // Predicated region
    $region6: #{tpu_custom_call.1} parent=1 // pred_check
      _
    $region7: #{tpu_custom_call.1} parent=1 // pred_check_branch
      %23 = sbr.rel (0) target = $region9
    $region8: #{tpu_custom_call.1} parent=1 // pred_region
      %s25 = ssub.s32 7680, 7680
      %26 = vsyncadd [#allocation6], %s25
      %s27 = sshll.u32 [#allocation5], 4
      %s28 = int_to_ptr.vmem [resolvable:$true] %s27
      %33 = dma.hbm_to_vmem [thread:$0]  %s1, 7680, %s28, [#allocation6], 128, 128, 8
    $region9: #{tpu_custom_call.1} parent=1 // pred_fallthru
      _
    // Predicated region
    $region10: #{tpu_custom_call.1} parent=1 // pred_check
      _
    $region11: #{tpu_custom_call.1} parent=1 // pred_check_branch
      %35 = sbr.rel (0) target = $region13
    $region12: #{tpu_custom_call.1} parent=1 // pred_region
      %36 = dma.done [#allocation3], 128
    $region13: #{tpu_custom_call.1} parent=1 // pred_fallthru
      _
    // Predicated region
    $region14: #{tpu_custom_call.1} parent=1 // pred_check
      _
    $region15: #{tpu_custom_call.1} parent=1 // pred_check_branch
      %38 = sbr.rel (0) target = $region17
    $region16: #{tpu_custom_call.1} parent=1 // pred_region
      %39 = dma.done [#allocation6], 7680
    $region17: #{tpu_custom_call.1} parent=1 // pred_fallthru
      _
    %v40 = vld [vmem:[#allocation5] sm:$0xff]
    %v41 = vld [vmem:[#allocation5 + $0x8] sm:$0x1]
    %v42 = vld [vmem:[#allocation5 + $0x10] sm:$0x1]
    %v43 = vld [vmem:[#allocation5 + $0x18] sm:$0x1]
    %v44 = vld [vmem:[#allocation5 + $0x20] sm:$0xff]
    %v45 = vld [vmem:[#allocation5 + $0x28] sm:$0x1]
    %v46 = vld [vmem:[#allocation5 + $0x30] sm:$0x1]
    %v47 = vld [vmem:[#allocation5 + $0x38] sm:$0x1]
    %v48 = vld [vmem:[#allocation5 + $0x40] sm:$0x1]
    %v49 = vld [vmem:[#allocation5 + $0x48] sm:$0x1]
    %v50 = vld [vmem:[#allocation5 + $0x50] sm:$0xff]
    %v51 = vld [vmem:[#allocation5 + $0x58] sm:$0x1]
    %v52 = vld [vmem:[#allocation5 + $0x60] sm:$0xff]
    %v53 = vld [vmem:[#allocation5 + $0x68] sm:$0xff]
    %v54 = vld [vmem:[#allocation5 + $0x70] sm:$0x1]
    %v55 = vld [vmem:[#allocation5 + $0x78] sm:$0x1]
    %v56 = vld [vmem:[#allocation5 + $0x80] sm:$0x1]
    %v57 = vld [vmem:[#allocation5 + $0x88] sm:$0xff]
    %v58 = vld [vmem:[#allocation5 + $0x90] sm:$0xff]
    %v59 = vld [vmem:[#allocation5 + $0x98] sm:$0x1]
    %v60 = vld [vmem:[#allocation5 + $0xa0] sm:$0x1]
    %v61 = vld [vmem:[#allocation5 + $0xa8] sm:$0x1]
    %v62 = vld [vmem:[#allocation5 + $0xb0] sm:$0x1]
    %v63 = vld [vmem:[#allocation5 + $0xb8] sm:$0x1]
    %v64 = vld [vmem:[#allocation5 + $0xc0] sm:$0x1]
    %v65 = vld [vmem:[#allocation5 + $0xc8] sm:$0x1]
    %v66 = vld [vmem:[#allocation5 + $0xd0] sm:$0xff]
    %v67 = vld [vmem:[#allocation5 + $0xd8] sm:$0xff]
    %v68 = vld [vmem:[#allocation5 + $0xe0] sm:$0x1]
    %v69 = vld [vmem:[#allocation5 + $0xe8] sm:$0x1]
    %v70 = vld [vmem:[#allocation5 + $0xf0] sm:$0x1]
    %v71 = vld [vmem:[#allocation5 + $0xf8] sm:$0xff]
    %v72 = vld [vmem:[#allocation5 + $0x100] sm:$0xff]
    %v73 = vld [vmem:[#allocation5 + $0x108] sm:$0x1]
    %v74 = vld [vmem:[#allocation5 + $0x110] sm:$0x1]
    %v75 = vld [vmem:[#allocation5 + $0x118] sm:$0x1]
    %v76 = vld [vmem:[#allocation5 + $0x120] sm:$0x1]
    %v77 = vld [vmem:[#allocation5 + $0x128] sm:$0x1]
    %v78 = vld [vmem:[#allocation5 + $0x130] sm:$0x1]
    %v79 = vld [vmem:[#allocation5 + $0x138] sm:$0x1]
    %v80 = vld [vmem:[#allocation5 + $0x140] sm:$0xff]
    %v81 = vld [vmem:[#allocation5 + $0x148] sm:$0xff]
    %v82 = vld [vmem:[#allocation5 + $0x150] sm:$0x1]
    %v83 = vld [vmem:[#allocation5 + $0x158] sm:$0x1]
    %v84 = vld [vmem:[#allocation5 + $0x160] sm:$0x1]
    %v85 = vld [vmem:[#allocation5 + $0x168] sm:$0xff]
    %v86 = vld [vmem:[#allocation5 + $0x170] sm:$0xff]
    %v87 = vld [vmem:[#allocation5 + $0x178] sm:$0x1]
    %v88 = vld [vmem:[#allocation5 + $0x180] sm:$0x1]
    %v89 = vld [vmem:[#allocation5 + $0x188] sm:$0x1]
    %v90 = vld [vmem:[#allocation5 + $0x190] sm:$0x1]
    %v91 = vld [vmem:[#allocation5 + $0x198] sm:$0x1]
    %v92 = vld [vmem:[#allocation5 + $0x1a0] sm:$0x1]
    %v93 = vld [vmem:[#allocation5 + $0x1a8] sm:$0x1]
    %v94 = vld [vmem:[#allocation5 + $0x1b0] sm:$0xff]
    %v95 = vld [vmem:[#allocation5 + $0x1b8] sm:$0xff]
    %v96 = vld [vmem:[#allocation5 + $0x1c0] sm:$0x1]
    %v97 = vld [vmem:[#allocation5 + $0x1c8] sm:$0xff]
    %v98 = vld [vmem:[#allocation5 + $0x1d0] sm:$0xff]
    %v99 = vld [vmem:[#allocation5 + $0x1d8] sm:$0x1]
    %v100 = vld [vmem:[#allocation2] sm:$0xff]
    %vm101 = vcmask 130048
    %v102 = vsel %vm101, %v100, 0.0
    %v103 = vrot.slane %v102, 4
    %v104 = vadd.f32 %v102, %v103
    %v105 = vrot.slane %v104, 2
    %v106 = vadd.f32 %v104, %v105
    %v107 = vrot.slane %v106, 1
    %v108 = vadd.f32 %v106, %v107
    %v109 = vmul.f32 %v108, 0.125
    %v110 = vmul.f32 %v100, %v100
    %v111 = vsel %vm101, %v110, 0.0
    %v112 = vrot.slane %v111, 4
    %v113 = vadd.f32 %v111, %v112
    %v114 = vrot.slane %v113, 2
    %v115 = vadd.f32 %v113, %v114
    %v116 = vrot.slane %v115, 1
    %v117 = vadd.f32 %v115, %v116
    %v118 = vmul.f32 %v117, 0.125
    %v119 = vmul.f32 %v109, %v109
    %v120 = vsub.f32 %v118, %v119
    %v121 = vsub.f32 %v100, %v109
    %v122 = vadd.f32 %v120, 1e-05
    %v123 = vrsqrt.pop %v122
    %v124 = vmul.f32 %v121, %v123
    %v125 = vlaneseq
    %v126 = vshrl.u32 %v125, 7
    %v127 = vsub.s32 0, %v126
    %v128 = vrot.slane %v49, %v127
    %v129 = vmul.f32 %v124, %v128
    %v130 = vlaneseq
    %v131 = vshrl.u32 %v130, 7
    %v132 = vsub.s32 0, %v131
    %v133 = vrot.slane %v48, %v132
    %v134 = vadd.f32 %v129, %v133
    %v135 = vlaneseq
    %v136 = vshrl.u32 %v135, 7
    %v137 = vsub.s32 0, %v136
    %v138 = vrot.slane %v96, %v137
    %v140 = vsel %vm101, %v134, 0
    %142 = vmatprep.subr.mxu0 0.0
    %143 = vmatpush1.msra.mxu0 %v94
    %144 = vmatprep.subr.mxu0 0.0
    %145 = vmatpush1.msra.mxu0 %v95
    %146 = vmatprep.subr.mxu0 0.0
    %147 = vmatpush1.msra.mxu0 0.0
    %148 = vmatprep.subr.mxu0 0.0
    %149 = vmatpush1.msra.mxu0 0.0
    %150 = vmatprep.subr.mxu0 0.0
    %151 = vmatpush1.msra.mxu0 0.0
    %152 = vmatprep.subr.mxu0 0.0
    %153 = vmatpush1.msra.mxu0 0.0
    %154 = vmatprep.subr.mxu0 0.0
    %155 = vmatpush1.msra.mxu0 0.0
    %156 = vmatprep.subr.mxu0 0.0
    %157 = vmatpush1.msra.mxu0 0.0
    %158 = vmatprep.subr.mxu0 0.0
    %159 = vmatpush1.msra.mxu0 0.0
    %160 = vmatprep.subr.mxu0 0.0
    %161 = vmatpush1.msra.mxu0 0.0
    %162 = vmatprep.subr.mxu0 0.0
    %163 = vmatpush1.msra.mxu0 0.0
    %164 = vmatprep.subr.mxu0 0.0
    %165 = vmatpush1.msra.mxu0 0.0
    %166 = vmatprep.subr.mxu0 0.0
    %167 = vmatpush1.msra.mxu0 0.0
    %168 = vmatprep.subr.mxu0 0.0
    %169 = vmatpush1.msra.mxu0 0.0
    %170 = vmatprep.subr.mxu0 0.0
    %171 = vmatpush1.msra.mxu0 0.0
    %172 = vmatprep.subr.mxu0 0.0
    %173 = vmatpush1.msra.mxu0 0.0
    %174 = vmatprep.subr.mxu0 0.0
    %175 = vmatpush1.msra.mxu0 0.0
    %176 = vmatprep.subr.mxu0 0.0
    %177 = vmatpush1.msra.mxu0 0.0
    %178 = vmatprep.subr.mxu0 0.0
    %179 = vmatpush1.msra.mxu0 0.0
    %180 = vmatprep.subr.mxu0 0.0
    %181 = vmatpush1.msra.mxu0 0.0
    %182 = vmatprep.subr.mxu0 0.0
    %183 = vmatpush1.msra.mxu0 0.0
    %184 = vmatprep.subr.mxu0 0.0
    %185 = vmatpush1.msra.mxu0 0.0
    %186 = vmatprep.subr.mxu0 0.0
    %187 = vmatpush1.msra.mxu0 0.0
    %188 = vmatprep.subr.mxu0 0.0
    %189 = vmatpush1.msra.mxu0 0.0
    %190 = vmatprep.subr.mxu0 0.0
    %191 = vmatpush1.msra.mxu0 0.0
    %192 = vmatprep.subr.mxu0 0.0
    %193 = vmatpush1.msra.mxu0 0.0
    %194 = vmatprep.subr.mxu0 0.0
    %195 = vmatpush1.msra.mxu0 0.0
    %196 = vmatprep.subr.mxu0 0.0
    %197 = vmatpush1.msra.mxu0 0.0
    %198 = vmatprep.subr.mxu0 0.0
    %199 = vmatpush1.msra.mxu0 0.0
    %200 = vmatprep.subr.mxu0 0.0
    %201 = vmatpush1.msra.mxu0 0.0
    %202 = vmatprep.subr.mxu0 0.0
    %203 = vmatpush1.msra.mxu0 0.0
    %204 = vmatprep.subr.mxu0 0.0
    %205 = vmatpush1.msra.mxu0 0.0
    %206 = vmatprep.mubr.f32.mxu0 0.0
    %207 = vmatmul.mubr.f32.gmra.mrb[0].mxu0 %v140
    %v208 = vpop.f32.mrb[0].mxu0
    %v209 = vadd.f32 %v138, %v208
    %v210 = vpop.f32.mrb[0].mxu0
    %211 = vdwg.mxu0
    %vm212 = vcmask 261120
    %v213 = vsel %vm212, %v209, 0.0
    %v214 = vrot.slane %v213, 4
    %v215 = vadd.f32 %v213, %v214
    %v216 = vrot.slane %v215, 2
    %v217 = vadd.f32 %v215, %v216
    %v218 = vrot.slane %v217, 1
    %v219 = vadd.f32 %v217, %v218
    %v220 = vmul.f32 %v219, 0.125
    %v221 = vmul.f32 %v209, %v209
    %v222 = vsel %vm212, %v221, 0.0
    %v223 = vrot.slane %v222, 4
    %v224 = vadd.f32 %v222, %v223
    %v225 = vrot.slane %v224, 2
    %v226 = vadd.f32 %v224, %v225
    %v227 = vrot.slane %v226, 1
    %v228 = vadd.f32 %v226, %v227
    %v229 = vmul.f32 %v228, 0.125
    %v230 = vmul.f32 %v220, %v220
    %v231 = vsub.f32 %v229, %v230
    %v232 = vsub.f32 %v209, %v220
    %v233 = vadd.f32 %v231, 1e-05
    %v234 = vrsqrt.pop %v233
    %v235 = vmul.f32 %v232, %v234
    %v236 = vlaneseq
    %v237 = vshrl.u32 %v236, 7
    %v238 = vsub.s32 0, %v237
    %v239 = vrot.slane %v63, %v238
    %v240 = vmul.f32 %v235, %v239
    %v241 = vlaneseq
    %v242 = vshrl.u32 %v241, 7
    %v243 = vsub.s32 0, %v242
    %v244 = vrot.slane %v62, %v243
    %v245 = vadd.f32 %v240, %v244
    %v246 = vxor.u32 %v245, 2147483648
    %v247 = vmul.f32 %v246, 1.442695
    %v248 = vpow.pop %v247
    %v249 = vadd.f32 %v248, 1.0
    %v250 = vrcp.pop %v249
    %v251 = vmul.f32 1.0, %v250
    %253 = vrot.lane.b32.xlu0 %v251, 112
    %v254 = vpop.permute.xlu0 %253
    %v256 = vmul.f32 %v245, %v254
    %v257 = vlaneseq
    %v258 = vshrl.u32 %v257, 7
    %v259 = vsub.s32 0, %v258
    %v260 = vrot.slane %v99, %v259
    %v262 = vsel %vm101, %v256, 0
    %264 = vmatprep.subr.mxu0 0.0
    %265 = vmatpush1.msra.mxu0 %v97
    %266 = vmatprep.subr.mxu0 0.0
    %267 = vmatpush1.msra.mxu0 %v98
    %268 = vmatprep.subr.mxu0 0.0
    %269 = vmatpush1.msra.mxu0 0.0
    %270 = vmatprep.subr.mxu0 0.0
    %271 = vmatpush1.msra.mxu0 0.0
    %272 = vmatprep.subr.mxu0 0.0
    %273 = vmatpush1.msra.mxu0 0.0
    %274 = vmatprep.subr.mxu0 0.0
    %275 = vmatpush1.msra.mxu0 0.0
    %276 = vmatprep.subr.mxu0 0.0
    %277 = vmatpush1.msra.mxu0 0.0
    %278 = vmatprep.subr.mxu0 0.0
    %279 = vmatpush1.msra.mxu0 0.0
    %280 = vmatprep.subr.mxu0 0.0
    %281 = vmatpush1.msra.mxu0 0.0
    %282 = vmatprep.subr.mxu0 0.0
    %283 = vmatpush1.msra.mxu0 0.0
    %284 = vmatprep.subr.mxu0 0.0
    %285 = vmatpush1.msra.mxu0 0.0
    %286 = vmatprep.subr.mxu0 0.0
    %287 = vmatpush1.msra.mxu0 0.0
    %288 = vmatprep.subr.mxu0 0.0
    %289 = vmatpush1.msra.mxu0 0.0
    %290 = vmatprep.subr.mxu0 0.0
    %291 = vmatpush1.msra.mxu0 0.0
    %292 = vmatprep.subr.mxu0 0.0
    %293 = vmatpush1.msra.mxu0 0.0
    %294 = vmatprep.subr.mxu0 0.0
    %295 = vmatpush1.msra.mxu0 0.0
    %296 = vmatprep.subr.mxu0 0.0
    %297 = vmatpush1.msra.mxu0 0.0
    %298 = vmatprep.subr.mxu0 0.0
    %299 = vmatpush1.msra.mxu0 0.0
    %300 = vmatprep.subr.mxu0 0.0
    %301 = vmatpush1.msra.mxu0 0.0
    %302 = vmatprep.subr.mxu0 0.0
    %303 = vmatpush1.msra.mxu0 0.0
    %304 = vmatprep.subr.mxu0 0.0
    %305 = vmatpush1.msra.mxu0 0.0
    %306 = vmatprep.subr.mxu0 0.0
    %307 = vmatpush1.msra.mxu0 0.0
    %308 = vmatprep.subr.mxu0 0.0
    %309 = vmatpush1.msra.mxu0 0.0
    %310 = vmatprep.subr.mxu0 0.0
    %311 = vmatpush1.msra.mxu0 0.0
    %312 = vmatprep.subr.mxu0 0.0
    %313 = vmatpush1.msra.mxu0 0.0
    %314 = vmatprep.subr.mxu0 0.0
    %315 = vmatpush1.msra.mxu0 0.0
    %316 = vmatprep.subr.mxu0 0.0
    %317 = vmatpush1.msra.mxu0 0.0
    %318 = vmatprep.subr.mxu0 0.0
    %319 = vmatpush1.msra.mxu0 0.0
    %320 = vmatprep.subr.mxu0 0.0
    %321 = vmatpush1.msra.mxu0 0.0
    %322 = vmatprep.subr.mxu0 0.0
    %323 = vmatpush1.msra.mxu0 0.0
    %324 = vmatprep.subr.mxu0 0.0
    %325 = vmatpush1.msra.mxu0 0.0
    %326 = vmatprep.subr.mxu0 0.0
    %327 = vmatpush1.msra.mxu0 0.0
    %328 = vmatprep.mubr.f32.mxu0 0.0
    %329 = vmatmul.mubr.f32.gmra.mrb[0].mxu0 %v262
    %v330 = vpop.f32.mrb[0].mxu0
    %v331 = vadd.f32 %v260, %v330
    %v332 = vpop.f32.mrb[0].mxu0
    %333 = vdwg.mxu0
    %v334 = vsel %vm212, %v331, 0.0
    %v335 = vrot.slane %v334, 4
    %v336 = vadd.f32 %v334, %v335
    %v337 = vrot.slane %v336, 2
    %v338 = vadd.f32 %v336, %v337
    %v339 = vrot.slane %v338, 1
    %v340 = vadd.f32 %v338, %v339
    %v341 = vmul.f32 %v340, 0.125
    %v342 = vmul.f32 %v331, %v331
    %v343 = vsel %vm212, %v342, 0.0
    %v344 = vrot.slane %v343, 4
    %v345 = vadd.f32 %v343, %v344
    %v346 = vrot.slane %v345, 2
    %v347 = vadd.f32 %v345, %v346
    %v348 = vrot.slane %v347, 1
    %v349 = vadd.f32 %v347, %v348
    %v350 = vmul.f32 %v349, 0.125
    %v351 = vmul.f32 %v341, %v341
    %v352 = vsub.f32 %v350, %v351
    %v353 = vsub.f32 %v331, %v341
    %v354 = vadd.f32 %v352, 1e-05
    %v355 = vrsqrt.pop %v354
    %v356 = vmul.f32 %v353, %v355
    %v357 = vlaneseq
    %v358 = vshrl.u32 %v357, 7
    %v359 = vsub.s32 0, %v358
    %v360 = vrot.slane %v65, %v359
    %v361 = vmul.f32 %v356, %v360
    %v362 = vlaneseq
    %v363 = vshrl.u32 %v362, 7
    %v364 = vsub.s32 0, %v363
    %v365 = vrot.slane %v64, %v364
    %v366 = vadd.f32 %v361, %v365
    %v367 = vxor.u32 %v366, 2147483648
    %v368 = vmul.f32 %v367, 1.442695
    %v369 = vpow.pop %v368
    %v370 = vadd.f32 %v369, 1.0
    %v371 = vrcp.pop %v370
    %v372 = vmul.f32 1.0, %v371
    %374 = vrot.lane.b32.xlu0 %v372, 112
    %v375 = vpop.permute.xlu0 %374
    %v377 = vmul.f32 %v366, %v375
    %v378 = vadd.f32 %v256, %v377
    %v379 = vmul.f32 %v378, 0.70710677
    %v380 = vlaneseq
    %v381 = vshrl.u32 %v380, 7
    %v382 = vsub.s32 0, %v381
    %v383 = vrot.slane %v54, %v382
    %v385 = vsel %vm101, %v379, 0
    %387 = vmatprep.subr.mxu0 0.0
    %388 = vmatpush1.msra.mxu0 %v52
    %389 = vmatprep.subr.mxu0 0.0
    %390 = vmatpush1.msra.mxu0 %v53
    %391 = vmatprep.subr.mxu0 0.0
    %392 = vmatpush1.msra.mxu0 0.0
    %393 = vmatprep.subr.mxu0 0.0
    %394 = vmatpush1.msra.mxu0 0.0
    %395 = vmatprep.subr.mxu0 0.0
    %396 = vmatpush1.msra.mxu0 0.0
    %397 = vmatprep.subr.mxu0 0.0
    %398 = vmatpush1.msra.mxu0 0.0
    %399 = vmatprep.subr.mxu0 0.0
    %400 = vmatpush1.msra.mxu0 0.0
    %401 = vmatprep.subr.mxu0 0.0
    %402 = vmatpush1.msra.mxu0 0.0
    %403 = vmatprep.subr.mxu0 0.0
    %404 = vmatpush1.msra.mxu0 0.0
    %405 = vmatprep.subr.mxu0 0.0
    %406 = vmatpush1.msra.mxu0 0.0
    %407 = vmatprep.subr.mxu0 0.0
    %408 = vmatpush1.msra.mxu0 0.0
    %409 = vmatprep.subr.mxu0 0.0
    %410 = vmatpush1.msra.mxu0 0.0
    %411 = vmatprep.subr.mxu0 0.0
    %412 = vmatpush1.msra.mxu0 0.0
    %413 = vmatprep.subr.mxu0 0.0
    %414 = vmatpush1.msra.mxu0 0.0
    %415 = vmatprep.subr.mxu0 0.0
    %416 = vmatpush1.msra.mxu0 0.0
    %417 = vmatprep.subr.mxu0 0.0
    %418 = vmatpush1.msra.mxu0 0.0
    %419 = vmatprep.subr.mxu0 0.0
    %420 = vmatpush1.msra.mxu0 0.0
    %421 = vmatprep.subr.mxu0 0.0
    %422 = vmatpush1.msra.mxu0 0.0
    %423 = vmatprep.subr.mxu0 0.0
    %424 = vmatpush1.msra.mxu0 0.0
    %425 = vmatprep.subr.mxu0 0.0
    %426 = vmatpush1.msra.mxu0 0.0
    %427 = vmatprep.subr.mxu0 0.0
    %428 = vmatpush1.msra.mxu0 0.0
    %429 = vmatprep.subr.mxu0 0.0
    %430 = vmatpush1.msra.mxu0 0.0
    %431 = vmatprep.subr.mxu0 0.0
    %432 = vmatpush1.msra.mxu0 0.0
    %433 = vmatprep.subr.mxu0 0.0
    %434 = vmatpush1.msra.mxu0 0.0
    %435 = vmatprep.subr.mxu0 0.0
    %436 = vmatpush1.msra.mxu0 0.0
    %437 = vmatprep.subr.mxu0 0.0
    %438 = vmatpush1.msra.mxu0 0.0
    %439 = vmatprep.subr.mxu0 0.0
    %440 = vmatpush1.msra.mxu0 0.0
    %441 = vmatprep.subr.mxu0 0.0
    %442 = vmatpush1.msra.mxu0 0.0
    %443 = vmatprep.subr.mxu0 0.0
    %444 = vmatpush1.msra.mxu0 0.0
    %445 = vmatprep.subr.mxu0 0.0
    %446 = vmatpush1.msra.mxu0 0.0
    %447 = vmatprep.subr.mxu0 0.0
    %448 = vmatpush1.msra.mxu0 0.0
    %449 = vmatprep.subr.mxu0 0.0
    %450 = vmatpush1.msra.mxu0 0.0
    %451 = vmatprep.mubr.f32.mxu0 0.0
    %452 = vmatmul.mubr.f32.gmra.mrb[0].mxu0 %v385
    %v453 = vpop.f32.mrb[0].mxu0
    %v454 = vadd.f32 %v383, %v453
    %v455 = vpop.f32.mrb[0].mxu0
    %456 = vdwg.mxu0
    %v457 = vsel %vm212, %v454, 0.0
    %v458 = vrot.slane %v457, 4
    %v459 = vadd.f32 %v457, %v458
    %v460 = vrot.slane %v459, 2
    %v461 = vadd.f32 %v459, %v460
    %v462 = vrot.slane %v461, 1
    %v463 = vadd.f32 %v461, %v462
    %v464 = vmul.f32 %v463, 0.125
    %v465 = vmul.f32 %v454, %v454
    %v466 = vsel %vm212, %v465, 0.0
    %v467 = vrot.slane %v466, 4
    %v468 = vadd.f32 %v466, %v467
    %v469 = vrot.slane %v468, 2
    %v470 = vadd.f32 %v468, %v469
    %v471 = vrot.slane %v470, 1
    %v472 = vadd.f32 %v470, %v471
    %v473 = vmul.f32 %v472, 0.125
    %v474 = vmul.f32 %v464, %v464
    %v475 = vsub.f32 %v473, %v474
    %v476 = vsub.f32 %v454, %v464
    %v477 = vadd.f32 %v475, 1e-05
    %v478 = vrsqrt.pop %v477
    %v479 = vmul.f32 %v476, %v478
    %v480 = vlaneseq
    %v481 = vshrl.u32 %v480, 7
    %v482 = vsub.s32 0, %v481
    %v483 = vrot.slane %v56, %v482
    %v484 = vmul.f32 %v479, %v483
    %v485 = vlaneseq
    %v486 = vshrl.u32 %v485, 7
    %v487 = vsub.s32 0, %v486
    %v488 = vrot.slane %v55, %v487
    %v489 = vadd.f32 %v484, %v488
    %v490 = vxor.u32 %v489, 2147483648
    %v491 = vmul.f32 %v490, 1.442695
    %v492 = vpow.pop %v491
    %v493 = vadd.f32 %v492, 1.0
    %v494 = vrcp.pop %v493
    %v495 = vmul.f32 1.0, %v494
    %497 = vrot.lane.b32.xlu0 %v495, 112
    %v498 = vpop.permute.xlu0 %497
    %v500 = vmul.f32 %v489, %v498
    %v501 = vadd.f32 %v379, %v500
    %v502 = vmul.f32 %v501, 0.70710677
    %v503 = vlaneseq
    %v504 = vshrl.u32 %v503, 7
    %v505 = vsub.s32 0, %v504
    %v506 = vrot.slane %v59, %v505
    %v508 = vsel %vm101, %v502, 0
    %510 = vmatprep.subr.mxu0 0.0
    %511 = vmatpush1.msra.mxu0 %v57
    %512 = vmatprep.subr.mxu0 0.0
    %513 = vmatpush1.msra.mxu0 %v58
    %514 = vmatprep.subr.mxu0 0.0
    %515 = vmatpush1.msra.mxu0 0.0
    %516 = vmatprep.subr.mxu0 0.0
    %517 = vmatpush1.msra.mxu0 0.0
    %518 = vmatprep.subr.mxu0 0.0
    %519 = vmatpush1.msra.mxu0 0.0
    %520 = vmatprep.subr.mxu0 0.0
    %521 = vmatpush1.msra.mxu0 0.0
    %522 = vmatprep.subr.mxu0 0.0
    %523 = vmatpush1.msra.mxu0 0.0
    %524 = vmatprep.subr.mxu0 0.0
    %525 = vmatpush1.msra.mxu0 0.0
    %526 = vmatprep.subr.mxu0 0.0
    %527 = vmatpush1.msra.mxu0 0.0
    %528 = vmatprep.subr.mxu0 0.0
    %529 = vmatpush1.msra.mxu0 0.0
    %530 = vmatprep.subr.mxu0 0.0
    %531 = vmatpush1.msra.mxu0 0.0
    %532 = vmatprep.subr.mxu0 0.0
    %533 = vmatpush1.msra.mxu0 0.0
    %534 = vmatprep.subr.mxu0 0.0
    %535 = vmatpush1.msra.mxu0 0.0
    %536 = vmatprep.subr.mxu0 0.0
    %537 = vmatpush1.msra.mxu0 0.0
    %538 = vmatprep.subr.mxu0 0.0
    %539 = vmatpush1.msra.mxu0 0.0
    %540 = vmatprep.subr.mxu0 0.0
    %541 = vmatpush1.msra.mxu0 0.0
    %542 = vmatprep.subr.mxu0 0.0
    %543 = vmatpush1.msra.mxu0 0.0
    %544 = vmatprep.subr.mxu0 0.0
    %545 = vmatpush1.msra.mxu0 0.0
    %546 = vmatprep.subr.mxu0 0.0
    %547 = vmatpush1.msra.mxu0 0.0
    %548 = vmatprep.subr.mxu0 0.0
    %549 = vmatpush1.msra.mxu0 0.0
    %550 = vmatprep.subr.mxu0 0.0
    %551 = vmatpush1.msra.mxu0 0.0
    %552 = vmatprep.subr.mxu0 0.0
    %553 = vmatpush1.msra.mxu0 0.0
    %554 = vmatprep.subr.mxu0 0.0
    %555 = vmatpush1.msra.mxu0 0.0
    %556 = vmatprep.subr.mxu0 0.0
    %557 = vmatpush1.msra.mxu0 0.0
    %558 = vmatprep.subr.mxu0 0.0
    %559 = vmatpush1.msra.mxu0 0.0
    %560 = vmatprep.subr.mxu0 0.0
    %561 = vmatpush1.msra.mxu0 0.0
    %562 = vmatprep.subr.mxu0 0.0
    %563 = vmatpush1.msra.mxu0 0.0
    %564 = vmatprep.subr.mxu0 0.0
    %565 = vmatpush1.msra.mxu0 0.0
    %566 = vmatprep.subr.mxu0 0.0
    %567 = vmatpush1.msra.mxu0 0.0
    %568 = vmatprep.subr.mxu0 0.0
    %569 = vmatpush1.msra.mxu0 0.0
    %570 = vmatprep.subr.mxu0 0.0
    %571 = vmatpush1.msra.mxu0 0.0
    %572 = vmatprep.subr.mxu0 0.0
    %573 = vmatpush1.msra.mxu0 0.0
    %574 = vmatprep.mubr.f32.mxu0 0.0
    %575 = vmatmul.mubr.f32.gmra.mrb[0].mxu0 %v508
    %v576 = vpop.f32.mrb[0].mxu0
    %v577 = vadd.f32 %v506, %v576
    %v578 = vpop.f32.mrb[0].mxu0
    %579 = vdwg.mxu0
    %v580 = vsel %vm212, %v577, 0.0
    %v581 = vrot.slane %v580, 4
    %v582 = vadd.f32 %v580, %v581
    %v583 = vrot.slane %v582, 2
    %v584 = vadd.f32 %v582, %v583
    %v585 = vrot.slane %v584, 1
    %v586 = vadd.f32 %v584, %v585
    %v587 = vmul.f32 %v586, 0.125
    %v588 = vmul.f32 %v577, %v577
    %v589 = vsel %vm212, %v588, 0.0
    %v590 = vrot.slane %v589, 4
    %v591 = vadd.f32 %v589, %v590
    %v592 = vrot.slane %v591, 2
    %v593 = vadd.f32 %v591, %v592
    %v594 = vrot.slane %v593, 1
    %v595 = vadd.f32 %v593, %v594
    %v596 = vmul.f32 %v595, 0.125
    %v597 = vmul.f32 %v587, %v587
    %v598 = vsub.f32 %v596, %v597
    %v599 = vsub.f32 %v577, %v587
    %v600 = vadd.f32 %v598, 1e-05
    %v601 = vrsqrt.pop %v600
    %v602 = vmul.f32 %v599, %v601
    %v603 = vlaneseq
    %v604 = vshrl.u32 %v603, 7
    %v605 = vsub.s32 0, %v604
    %v606 = vrot.slane %v61, %v605
    %v607 = vmul.f32 %v602, %v606
    %v608 = vlaneseq
    %v609 = vshrl.u32 %v608, 7
    %v610 = vsub.s32 0, %v609
    %v611 = vrot.slane %v60, %v610
    %v612 = vadd.f32 %v607, %v611
    %v613 = vxor.u32 %v612, 2147483648
    %v614 = vmul.f32 %v613, 1.442695
    %v615 = vpow.pop %v614
    %v616 = vadd.f32 %v615, 1.0
    %v617 = vrcp.pop %v616
    %v618 = vmul.f32 1.0, %v617
    %620 = vrot.lane.b32.xlu0 %v618, 112
    %v621 = vpop.permute.xlu0 %620
    %v623 = vmul.f32 %v612, %v621
    %v624 = vadd.f32 %v502, %v623
    %v625 = vmul.f32 %v624, 0.70710677
    %v626 = vlaneseq
    %v627 = vshrl.u32 %v626, 7
    %v628 = vsub.s32 0, %v627
    %v629 = vrot.slane %v41, %v628
    %631 = vrot.lane.b32.xlu0 %v625, 120
    %v632 = vpop.permute.xlu0 %631
    %vm633 = vcmask 64512
    %v634 = vsel %vm633, %v632, 0
    %636 = vmatprep.subr.mxu0 0.0
    %637 = vmatpush1.msra.mxu0 %v40
    %638 = vmatprep.subr.mxu0 0.0
    %639 = vmatpush1.msra.mxu0 0.0
    %640 = vmatprep.subr.mxu0 0.0
    %641 = vmatpush1.msra.mxu0 0.0
    %642 = vmatprep.subr.mxu0 0.0
    %643 = vmatpush1.msra.mxu0 0.0
    %644 = vmatprep.subr.mxu0 0.0
    %645 = vmatpush1.msra.mxu0 0.0
    %646 = vmatprep.subr.mxu0 0.0
    %647 = vmatpush1.msra.mxu0 0.0
    %648 = vmatprep.subr.mxu0 0.0
    %649 = vmatpush1.msra.mxu0 0.0
    %650 = vmatprep.subr.mxu0 0.0
    %651 = vmatpush1.msra.mxu0 0.0
    %652 = vmatprep.subr.mxu0 0.0
    %653 = vmatpush1.msra.mxu0 0.0
    %654 = vmatprep.subr.mxu0 0.0
    %655 = vmatpush1.msra.mxu0 0.0
    %656 = vmatprep.subr.mxu0 0.0
    %657 = vmatpush1.msra.mxu0 0.0
    %658 = vmatprep.subr.mxu0 0.0
    %659 = vmatpush1.msra.mxu0 0.0
    %660 = vmatprep.subr.mxu0 0.0
    %661 = vmatpush1.msra.mxu0 0.0
    %662 = vmatprep.subr.mxu0 0.0
    %663 = vmatpush1.msra.mxu0 0.0
    %664 = vmatprep.subr.mxu0 0.0
    %665 = vmatpush1.msra.mxu0 0.0
    %666 = vmatprep.subr.mxu0 0.0
    %667 = vmatpush1.msra.mxu0 0.0
    %668 = vmatprep.subr.mxu0 0.0
    %669 = vmatpush1.msra.mxu0 0.0
    %670 = vmatprep.subr.mxu0 0.0
    %671 = vmatpush1.msra.mxu0 0.0
    %672 = vmatprep.subr.mxu0 0.0
    %673 = vmatpush1.msra.mxu0 0.0
    %674 = vmatprep.subr.mxu0 0.0
    %675 = vmatpush1.msra.mxu0 0.0
    %676 = vmatprep.subr.mxu0 0.0
    %677 = vmatpush1.msra.mxu0 0.0
    %678 = vmatprep.subr.mxu0 0.0
    %679 = vmatpush1.msra.mxu0 0.0
    %680 = vmatprep.subr.mxu0 0.0
    %681 = vmatpush1.msra.mxu0 0.0
    %682 = vmatprep.subr.mxu0 0.0
    %683 = vmatpush1.msra.mxu0 0.0
    %684 = vmatprep.subr.mxu0 0.0
    %685 = vmatpush1.msra.mxu0 0.0
    %686 = vmatprep.subr.mxu0 0.0
    %687 = vmatpush1.msra.mxu0 0.0
    %688 = vmatprep.subr.mxu0 0.0
    %689 = vmatpush1.msra.mxu0 0.0
    %690 = vmatprep.subr.mxu0 0.0
    %691 = vmatpush1.msra.mxu0 0.0
    %692 = vmatprep.subr.mxu0 0.0
    %693 = vmatpush1.msra.mxu0 0.0
    %694 = vmatprep.subr.mxu0 0.0
    %695 = vmatpush1.msra.mxu0 0.0
    %696 = vmatprep.subr.mxu0 0.0
    %697 = vmatpush1.msra.mxu0 0.0
    %698 = vmatprep.subr.mxu0 0.0
    %699 = vmatpush1.msra.mxu0 0.0
    %700 = vmatprep.mubr.f32.mxu0 0.0
    %701 = vmatmul.mubr.f32.gmra.mrb[0].mxu0 %v634
    %v702 = vpop.f32.mrb[0].mxu0
    %v703 = vadd.f32 %v629, %v702
    %v704 = vpop.f32.mrb[0].mxu0
    %705 = vdwg.mxu0
    %v706 = vsel %vm101, %v703, 0.0
    %v707 = vrot.slane %v706, 4
    %v708 = vadd.f32 %v706, %v707
    %v709 = vrot.slane %v708, 2
    %v710 = vadd.f32 %v708, %v709
    %v711 = vrot.slane %v710, 1
    %v712 = vadd.f32 %v710, %v711
    %v713 = vmul.f32 %v712, 0.125
    %v714 = vmul.f32 %v703, %v703
    %v715 = vsel %vm101, %v714, 0.0
    %v716 = vrot.slane %v715, 4
    %v717 = vadd.f32 %v715, %v716
    %v718 = vrot.slane %v717, 2
    %v719 = vadd.f32 %v717, %v718
    %v720 = vrot.slane %v719, 1
    %v721 = vadd.f32 %v719, %v720
    %v722 = vmul.f32 %v721, 0.125
    %v723 = vmul.f32 %v713, %v713
    %v724 = vsub.f32 %v722, %v723
    %v725 = vsub.f32 %v703, %v713
    %v726 = vadd.f32 %v724, 1e-05
    %v727 = vrsqrt.pop %v726
    %v728 = vmul.f32 %v725, %v727
    %v729 = vlaneseq
    %v730 = vshrl.u32 %v729, 7
    %v731 = vsub.s32 0, %v730
    %v732 = vrot.slane %v43, %v731
    %v733 = vmul.f32 %v728, %v732
    %v734 = vlaneseq
    %v735 = vshrl.u32 %v734, 7
    %v736 = vsub.s32 0, %v735
    %v737 = vrot.slane %v42, %v736
    %v738 = vadd.f32 %v733, %v737
    %v739 = vxor.u32 %v738, 2147483648
    %v740 = vmul.f32 %v739, 1.442695
    %v741 = vpow.pop %v740
    %v742 = vadd.f32 %v741, 1.0
    %v743 = vrcp.pop %v742
    %v744 = vmul.f32 1.0, %v743
    %v745 = vsub.f32 0.0, %v744
    %v746 = vadd.f32 %v744, 1e-10
    %v747 = vlog2.pop %v746
    %v748 = vmul.f32 %v747, 0.6931472
    %v749 = vmul.f32 %v745, %v748
    %v750 = vsel %vm101, %v749, 0.0
    %751 = vadd.xlane.f32.xlu0 %v750
    %v752 = vpop.xlane.xlu0 %751
    %v753 = vrot.slane %v752, 4
    %v754 = vadd.f32 %v752, %v753
    %v755 = vrot.slane %v754, 2
    %v756 = vadd.f32 %v754, %v755
    %v757 = vrot.slane %v756, 1
    %v758 = vadd.f32 %v756, %v757
    %s759 = vtos %v758
    %v760 = vrcp.pop 128.0
    %s761 = vtos %v760
    %s762 = smul.f32 %s759, %s761
    %s763 = sadd.f32 %s762, 0.0
    %v764 = vmul.f32 %v134, %v744
    %v766 = vsel %vm101, %v764, 0
    %768 = vmatprep.subr.mxu0 0.0
    %769 = vmatpush1.msra.mxu0 %v94
    %770 = vmatprep.subr.mxu0 0.0
    %771 = vmatpush1.msra.mxu0 %v95
    %772 = vmatprep.subr.mxu0 0.0
    %773 = vmatpush1.msra.mxu0 0.0
    %774 = vmatprep.subr.mxu0 0.0
    %775 = vmatpush1.msra.mxu0 0.0
    %776 = vmatprep.subr.mxu0 0.0
    %777 = vmatpush1.msra.mxu0 0.0
    %778 = vmatprep.subr.mxu0 0.0
    %779 = vmatpush1.msra.mxu0 0.0
    %780 = vmatprep.subr.mxu0 0.0
    %781 = vmatpush1.msra.mxu0 0.0
    %782 = vmatprep.subr.mxu0 0.0
    %783 = vmatpush1.msra.mxu0 0.0
    %784 = vmatprep.subr.mxu0 0.0
    %785 = vmatpush1.msra.mxu0 0.0
    %786 = vmatprep.subr.mxu0 0.0
    %787 = vmatpush1.msra.mxu0 0.0
    %788 = vmatprep.subr.mxu0 0.0
    %789 = vmatpush1.msra.mxu0 0.0
    %790 = vmatprep.subr.mxu0 0.0
    %791 = vmatpush1.msra.mxu0 0.0
    %792 = vmatprep.subr.mxu0 0.0
    %793 = vmatpush1.msra.mxu0 0.0
    %794 = vmatprep.subr.mxu0 0.0
    %795 = vmatpush1.msra.mxu0 0.0
    %796 = vmatprep.subr.mxu0 0.0
    %797 = vmatpush1.msra.mxu0 0.0
    %798 = vmatprep.subr.mxu0 0.0
    %799 = vmatpush1.msra.mxu0 0.0
    %800 = vmatprep.subr.mxu0 0.0
    %801 = vmatpush1.msra.mxu0 0.0
    %802 = vmatprep.subr.mxu0 0.0
    %803 = vmatpush1.msra.mxu0 0.0
    %804 = vmatprep.subr.mxu0 0.0
    %805 = vmatpush1.msra.mxu0 0.0
    %806 = vmatprep.subr.mxu0 0.0
    %807 = vmatpush1.msra.mxu0 0.0
    %808 = vmatprep.subr.mxu0 0.0
    %809 = vmatpush1.msra.mxu0 0.0
    %810 = vmatprep.subr.mxu0 0.0
    %811 = vmatpush1.msra.mxu0 0.0
    %812 = vmatprep.subr.mxu0 0.0
    %813 = vmatpush1.msra.mxu0 0.0
    %814 = vmatprep.subr.mxu0 0.0
    %815 = vmatpush1.msra.mxu0 0.0
    %816 = vmatprep.subr.mxu0 0.0
    %817 = vmatpush1.msra.mxu0 0.0
    %818 = vmatprep.subr.mxu0 0.0
    %819 = vmatpush1.msra.mxu0 0.0
    %820 = vmatprep.subr.mxu0 0.0
    %821 = vmatpush1.msra.mxu0 0.0
    %822 = vmatprep.subr.mxu0 0.0
    %823 = vmatpush1.msra.mxu0 0.0
    %824 = vmatprep.subr.mxu0 0.0
    %825 = vmatpush1.msra.mxu0 0.0
    %826 = vmatprep.subr.mxu0 0.0
    %827 = vmatpush1.msra.mxu0 0.0
    %828 = vmatprep.subr.mxu0 0.0
    %829 = vmatpush1.msra.mxu0 0.0
    %830 = vmatprep.subr.mxu0 0.0
    %831 = vmatpush1.msra.mxu0 0.0
    %832 = vmatprep.mubr.f32.mxu0 0.0
    %833 = vmatmul.mubr.f32.gmra.mrb[0].mxu0 %v766
    %v834 = vpop.f32.mrb[0].mxu0
    %v835 = vadd.f32 %v138, %v834
    %v836 = vpop.f32.mrb[0].mxu0
    %837 = vdwg.mxu0
    %v838 = vsel %vm212, %v835, 0.0
    %v839 = vrot.slane %v838, 4
    %v840 = vadd.f32 %v838, %v839
    %v841 = vrot.slane %v840, 2
    %v842 = vadd.f32 %v840, %v841
    %v843 = vrot.slane %v842, 1
    %v844 = vadd.f32 %v842, %v843
    %v845 = vmul.f32 %v844, 0.125
    %v846 = vmul.f32 %v835, %v835
    %v847 = vsel %vm212, %v846, 0.0
    %v848 = vrot.slane %v847, 4
    %v849 = vadd.f32 %v847, %v848
    %v850 = vrot.slane %v849, 2
    %v851 = vadd.f32 %v849, %v850
    %v852 = vrot.slane %v851, 1
    %v853 = vadd.f32 %v851, %v852
    %v854 = vmul.f32 %v853, 0.125
    %v855 = vmul.f32 %v845, %v845
    %v856 = vsub.f32 %v854, %v855
    %v857 = vsub.f32 %v835, %v845
    %v858 = vadd.f32 %v856, 1e-05
    %v859 = vrsqrt.pop %v858
    %v860 = vmul.f32 %v857, %v859
    %v861 = vlaneseq
    %v862 = vshrl.u32 %v861, 7
    %v863 = vsub.s32 0, %v862
    %v864 = vrot.slane %v77, %v863
    %v865 = vmul.f32 %v860, %v864
    %v866 = vlaneseq
    %v867 = vshrl.u32 %v866, 7
    %v868 = vsub.s32 0, %v867
    %v869 = vrot.slane %v76, %v868
    %v870 = vadd.f32 %v865, %v869
    %v871 = vxor.u32 %v870, 2147483648
    %v872 = vmul.f32 %v871, 1.442695
    %v873 = vpow.pop %v872
    %v874 = vadd.f32 %v873, 1.0
    %v875 = vrcp.pop %v874
    %v876 = vmul.f32 1.0, %v875
    %878 = vrot.lane.b32.xlu0 %v876, 112
    %v879 = vpop.permute.xlu0 %878
    %v881 = vmul.f32 %v870, %v879
    %v883 = vsel %vm101, %v881, 0
    %885 = vmatprep.subr.mxu0 0.0
    %886 = vmatpush1.msra.mxu0 %v97
    %887 = vmatprep.subr.mxu0 0.0
    %888 = vmatpush1.msra.mxu0 %v98
    %889 = vmatprep.subr.mxu0 0.0
    %890 = vmatpush1.msra.mxu0 0.0
    %891 = vmatprep.subr.mxu0 0.0
    %892 = vmatpush1.msra.mxu0 0.0
    %893 = vmatprep.subr.mxu0 0.0
    %894 = vmatpush1.msra.mxu0 0.0
    %895 = vmatprep.subr.mxu0 0.0
    %896 = vmatpush1.msra.mxu0 0.0
    %897 = vmatprep.subr.mxu0 0.0
    %898 = vmatpush1.msra.mxu0 0.0
    %899 = vmatprep.subr.mxu0 0.0
    %900 = vmatpush1.msra.mxu0 0.0
    %901 = vmatprep.subr.mxu0 0.0
    %902 = vmatpush1.msra.mxu0 0.0
    %903 = vmatprep.subr.mxu0 0.0
    %904 = vmatpush1.msra.mxu0 0.0
    %905 = vmatprep.subr.mxu0 0.0
    %906 = vmatpush1.msra.mxu0 0.0
    %907 = vmatprep.subr.mxu0 0.0
    %908 = vmatpush1.msra.mxu0 0.0
    %909 = vmatprep.subr.mxu0 0.0
    %910 = vmatpush1.msra.mxu0 0.0
    %911 = vmatprep.subr.mxu0 0.0
    %912 = vmatpush1.msra.mxu0 0.0
    %913 = vmatprep.subr.mxu0 0.0
    %914 = vmatpush1.msra.mxu0 0.0
    %915 = vmatprep.subr.mxu0 0.0
    %916 = vmatpush1.msra.mxu0 0.0
    %917 = vmatprep.subr.mxu0 0.0
    %918 = vmatpush1.msra.mxu0 0.0
    %919 = vmatprep.subr.mxu0 0.0
    %920 = vmatpush1.msra.mxu0 0.0
    %921 = vmatprep.subr.mxu0 0.0
    %922 = vmatpush1.msra.mxu0 0.0
    %923 = vmatprep.subr.mxu0 0.0
    %924 = vmatpush1.msra.mxu0 0.0
    %925 = vmatprep.subr.mxu0 0.0
    %926 = vmatpush1.msra.mxu0 0.0
    %927 = vmatprep.subr.mxu0 0.0
    %928 = vmatpush1.msra.mxu0 0.0
    %929 = vmatprep.subr.mxu0 0.0
    %930 = vmatpush1.msra.mxu0 0.0
    %931 = vmatprep.subr.mxu0 0.0
    %932 = vmatpush1.msra.mxu0 0.0
    %933 = vmatprep.subr.mxu0 0.0
    %934 = vmatpush1.msra.mxu0 0.0
    %935 = vmatprep.subr.mxu0 0.0
    %936 = vmatpush1.msra.mxu0 0.0
    %937 = vmatprep.subr.mxu0 0.0
    %938 = vmatpush1.msra.mxu0 0.0
    %939 = vmatprep.subr.mxu0 0.0
    %940 = vmatpush1.msra.mxu0 0.0
    %941 = vmatprep.subr.mxu0 0.0
    %942 = vmatpush1.msra.mxu0 0.0
    %943 = vmatprep.subr.mxu0 0.0
    %944 = vmatpush1.msra.mxu0 0.0
    %945 = vmatprep.subr.mxu0 0.0
    %946 = vmatpush1.msra.mxu0 0.0
    %947 = vmatprep.subr.mxu0 0.0
    %948 = vmatpush1.msra.mxu0 0.0
    %949 = vmatprep.mubr.f32.mxu0 0.0
    %950 = vmatmul.mubr.f32.gmra.mrb[0].mxu0 %v883
    %v951 = vpop.f32.mrb[0].mxu0
    %v952 = vadd.f32 %v260, %v951
    %v953 = vpop.f32.mrb[0].mxu0
    %954 = vdwg.mxu0
    %v955 = vsel %vm212, %v952, 0.0
    %v956 = vrot.slane %v955, 4
    %v957 = vadd.f32 %v955, %v956
    %v958 = vrot.slane %v957, 2
    %v959 = vadd.f32 %v957, %v958
    %v960 = vrot.slane %v959, 1
    %v961 = vadd.f32 %v959, %v960
    %v962 = vmul.f32 %v961, 0.125
    %v963 = vmul.f32 %v952, %v952
    %v964 = vsel %vm212, %v963, 0.0
    %v965 = vrot.slane %v964, 4
    %v966 = vadd.f32 %v964, %v965
    %v967 = vrot.slane %v966, 2
    %v968 = vadd.f32 %v966, %v967
    %v969 = vrot.slane %v968, 1
    %v970 = vadd.f32 %v968, %v969
    %v971 = vmul.f32 %v970, 0.125
    %v972 = vmul.f32 %v962, %v962
    %v973 = vsub.f32 %v971, %v972
    %v974 = vsub.f32 %v952, %v962
    %v975 = vadd.f32 %v973, 1e-05
    %v976 = vrsqrt.pop %v975
    %v977 = vmul.f32 %v974, %v976
    %v978 = vlaneseq
    %v979 = vshrl.u32 %v978, 7
    %v980 = vsub.s32 0, %v979
    %v981 = vrot.slane %v79, %v980
    %v982 = vmul.f32 %v977, %v981
    %v983 = vlaneseq
    %v984 = vshrl.u32 %v983, 7
    %v985 = vsub.s32 0, %v984
    %v986 = vrot.slane %v78, %v985
    %v987 = vadd.f32 %v982, %v986
    %v988 = vxor.u32 %v987, 2147483648
    %v989 = vmul.f32 %v988, 1.442695
    %v990 = vpow.pop %v989
    %v991 = vadd.f32 %v990, 1.0
    %v992 = vrcp.pop %v991
    %v993 = vmul.f32 1.0, %v992
    %995 = vrot.lane.b32.xlu0 %v993, 112
    %v996 = vpop.permute.xlu0 %995
    %v998 = vmul.f32 %v987, %v996
    %v999 = vadd.f32 %v881, %v998
    %v1000 = vmul.f32 %v999, 0.70710677
    %v1001 = vlaneseq
    %v1002 = vshrl.u32 %v1001, 7
    %v1003 = vsub.s32 0, %v1002
    %v1004 = vrot.slane %v68, %v1003
    %v1006 = vsel %vm101, %v1000, 0
    %1008 = vmatprep.subr.mxu0 0.0
    %1009 = vmatpush1.msra.mxu0 %v66
    %1010 = vmatprep.subr.mxu0 0.0
    %1011 = vmatpush1.msra.mxu0 %v67
    %1012 = vmatprep.subr.mxu0 0.0
    %1013 = vmatpush1.msra.mxu0 0.0
    %1014 = vmatprep.subr.mxu0 0.0
    %1015 = vmatpush1.msra.mxu0 0.0
    %1016 = vmatprep.subr.mxu0 0.0
    %1017 = vmatpush1.msra.mxu0 0.0
    %1018 = vmatprep.subr.mxu0 0.0
    %1019 = vmatpush1.msra.mxu0 0.0
    %1020 = vmatprep.subr.mxu0 0.0
    %1021 = vmatpush1.msra.mxu0 0.0
    %1022 = vmatprep.subr.mxu0 0.0
    %1023 = vmatpush1.msra.mxu0 0.0
    %1024 = vmatprep.subr.mxu0 0.0
    %1025 = vmatpush1.msra.mxu0 0.0
    %1026 = vmatprep.subr.mxu0 0.0
    %1027 = vmatpush1.msra.mxu0 0.0
    %1028 = vmatprep.subr.mxu0 0.0
    %1029 = vmatpush1.msra.mxu0 0.0
    %1030 = vmatprep.subr.mxu0 0.0
    %1031 = vmatpush1.msra.mxu0 0.0
    %1032 = vmatprep.subr.mxu0 0.0
    %1033 = vmatpush1.msra.mxu0 0.0
    %1034 = vmatprep.subr.mxu0 0.0
    %1035 = vmatpush1.msra.mxu0 0.0
    %1036 = vmatprep.subr.mxu0 0.0
    %1037 = vmatpush1.msra.mxu0 0.0
    %1038 = vmatprep.subr.mxu0 0.0
    %1039 = vmatpush1.msra.mxu0 0.0
    %1040 = vmatprep.subr.mxu0 0.0
    %1041 = vmatpush1.msra.mxu0 0.0
    %1042 = vmatprep.subr.mxu0 0.0
    %1043 = vmatpush1.msra.mxu0 0.0
    %1044 = vmatprep.subr.mxu0 0.0
    %1045 = vmatpush1.msra.mxu0 0.0
    %1046 = vmatprep.subr.mxu0 0.0
    %1047 = vmatpush1.msra.mxu0 0.0
    %1048 = vmatprep.subr.mxu0 0.0
    %1049 = vmatpush1.msra.mxu0 0.0
    %1050 = vmatprep.subr.mxu0 0.0
    %1051 = vmatpush1.msra.mxu0 0.0
    %1052 = vmatprep.subr.mxu0 0.0
    %1053 = vmatpush1.msra.mxu0 0.0
    %1054 = vmatprep.subr.mxu0 0.0
    %1055 = vmatpush1.msra.mxu0 0.0
    %1056 = vmatprep.subr.mxu0 0.0
    %1057 = vmatpush1.msra.mxu0 0.0
    %1058 = vmatprep.subr.mxu0 0.0
    %1059 = vmatpush1.msra.mxu0 0.0
    %1060 = vmatprep.subr.mxu0 0.0
    %1061 = vmatpush1.msra.mxu0 0.0
    %1062 = vmatprep.subr.mxu0 0.0
    %1063 = vmatpush1.msra.mxu0 0.0
    %1064 = vmatprep.subr.mxu0 0.0
    %1065 = vmatpush1.msra.mxu0 0.0
    %1066 = vmatprep.subr.mxu0 0.0
    %1067 = vmatpush1.msra.mxu0 0.0
    %1068 = vmatprep.subr.mxu0 0.0
    %1069 = vmatpush1.msra.mxu0 0.0
    %1070 = vmatprep.subr.mxu0 0.0
    %1071 = vmatpush1.msra.mxu0 0.0
    %1072 = vmatprep.mubr.f32.mxu0 0.0
    %1073 = vmatmul.mubr.f32.gmra.mrb[0].mxu0 %v1006
    %v1074 = vpop.f32.mrb[0].mxu0
    %v1075 = vadd.f32 %v1004, %v1074
    %v1076 = vpop.f32.mrb[0].mxu0
    %1077 = vdwg.mxu0
    %v1078 = vsel %vm212, %v1075, 0.0
    %v1079 = vrot.slane %v1078, 4
    %v1080 = vadd.f32 %v1078, %v1079
    %v1081 = vrot.slane %v1080, 2
    %v1082 = vadd.f32 %v1080, %v1081
    %v1083 = vrot.slane %v1082, 1
    %v1084 = vadd.f32 %v1082, %v1083
    %v1085 = vmul.f32 %v1084, 0.125
    %v1086 = vmul.f32 %v1075, %v1075
    %v1087 = vsel %vm212, %v1086, 0.0
    %v1088 = vrot.slane %v1087, 4
    %v1089 = vadd.f32 %v1087, %v1088
    %v1090 = vrot.slane %v1089, 2
    %v1091 = vadd.f32 %v1089, %v1090
    %v1092 = vrot.slane %v1091, 1
    %v1093 = vadd.f32 %v1091, %v1092
    %v1094 = vmul.f32 %v1093, 0.125
    %v1095 = vmul.f32 %v1085, %v1085
    %v1096 = vsub.f32 %v1094, %v1095
    %v1097 = vsub.f32 %v1075, %v1085
    %v1098 = vadd.f32 %v1096, 1e-05
    %v1099 = vrsqrt.pop %v1098
    %v1100 = vmul.f32 %v1097, %v1099
    %v1101 = vlaneseq
    %v1102 = vshrl.u32 %v1101, 7
    %v1103 = vsub.s32 0, %v1102
    %v1104 = vrot.slane %v70, %v1103
    %v1105 = vmul.f32 %v1100, %v1104
    %v1106 = vlaneseq
    %v1107 = vshrl.u32 %v1106, 7
    %v1108 = vsub.s32 0, %v1107
    %v1109 = vrot.slane %v69, %v1108
    %v1110 = vadd.f32 %v1105, %v1109
    %v1111 = vxor.u32 %v1110, 2147483648
    %v1112 = vmul.f32 %v1111, 1.442695
    %v1113 = vpow.pop %v1112
    %v1114 = vadd.f32 %v1113, 1.0
    %v1115 = vrcp.pop %v1114
    %v1116 = vmul.f32 1.0, %v1115
    %1118 = vrot.lane.b32.xlu0 %v1116, 112
    %v1119 = vpop.permute.xlu0 %1118
    %v1121 = vmul.f32 %v1110, %v1119
    %v1122 = vadd.f32 %v1000, %v1121
    %v1123 = vmul.f32 %v1122, 0.70710677
    %v1124 = vlaneseq
    %v1125 = vshrl.u32 %v1124, 7
    %v1126 = vsub.s32 0, %v1125
    %v1127 = vrot.slane %v73, %v1126
    %v1129 = vsel %vm101, %v1123, 0
    %1131 = vmatprep.subr.mxu0 0.0
    %1132 = vmatpush1.msra.mxu0 %v71
    %1133 = vmatprep.subr.mxu0 0.0
    %1134 = vmatpush1.msra.mxu0 %v72
    %1135 = vmatprep.subr.mxu0 0.0
    %1136 = vmatpush1.msra.mxu0 0.0
    %1137 = vmatprep.subr.mxu0 0.0
    %1138 = vmatpush1.msra.mxu0 0.0
    %1139 = vmatprep.subr.mxu0 0.0
    %1140 = vmatpush1.msra.mxu0 0.0
    %1141 = vmatprep.subr.mxu0 0.0
    %1142 = vmatpush1.msra.mxu0 0.0
    %1143 = vmatprep.subr.mxu0 0.0
    %1144 = vmatpush1.msra.mxu0 0.0
    %1145 = vmatprep.subr.mxu0 0.0
    %1146 = vmatpush1.msra.mxu0 0.0
    %1147 = vmatprep.subr.mxu0 0.0
    %1148 = vmatpush1.msra.mxu0 0.0
    %1149 = vmatprep.subr.mxu0 0.0
    %1150 = vmatpush1.msra.mxu0 0.0
    %1151 = vmatprep.subr.mxu0 0.0
    %1152 = vmatpush1.msra.mxu0 0.0
    %1153 = vmatprep.subr.mxu0 0.0
    %1154 = vmatpush1.msra.mxu0 0.0
    %1155 = vmatprep.subr.mxu0 0.0
    %1156 = vmatpush1.msra.mxu0 0.0
    %1157 = vmatprep.subr.mxu0 0.0
    %1158 = vmatpush1.msra.mxu0 0.0
    %1159 = vmatprep.subr.mxu0 0.0
    %1160 = vmatpush1.msra.mxu0 0.0
    %1161 = vmatprep.subr.mxu0 0.0
    %1162 = vmatpush1.msra.mxu0 0.0
    %1163 = vmatprep.subr.mxu0 0.0
    %1164 = vmatpush1.msra.mxu0 0.0
    %1165 = vmatprep.subr.mxu0 0.0
    %1166 = vmatpush1.msra.mxu0 0.0
    %1167 = vmatprep.subr.mxu0 0.0
    %1168 = vmatpush1.msra.mxu0 0.0
    %1169 = vmatprep.subr.mxu0 0.0
    %1170 = vmatpush1.msra.mxu0 0.0
    %1171 = vmatprep.subr.mxu0 0.0
    %1172 = vmatpush1.msra.mxu0 0.0
    %1173 = vmatprep.subr.mxu0 0.0
    %1174 = vmatpush1.msra.mxu0 0.0
    %1175 = vmatprep.subr.mxu0 0.0
    %1176 = vmatpush1.msra.mxu0 0.0
    %1177 = vmatprep.subr.mxu0 0.0
    %1178 = vmatpush1.msra.mxu0 0.0
    %1179 = vmatprep.subr.mxu0 0.0
    %1180 = vmatpush1.msra.mxu0 0.0
    %1181 = vmatprep.subr.mxu0 0.0
    %1182 = vmatpush1.msra.mxu0 0.0
    %1183 = vmatprep.subr.mxu0 0.0
    %1184 = vmatpush1.msra.mxu0 0.0
    %1185 = vmatprep.subr.mxu0 0.0
    %1186 = vmatpush1.msra.mxu0 0.0
    %1187 = vmatprep.subr.mxu0 0.0
    %1188 = vmatpush1.msra.mxu0 0.0
    %1189 = vmatprep.subr.mxu0 0.0
    %1190 = vmatpush1.msra.mxu0 0.0
    %1191 = vmatprep.subr.mxu0 0.0
    %1192 = vmatpush1.msra.mxu0 0.0
    %1193 = vmatprep.subr.mxu0 0.0
    %1194 = vmatpush1.msra.mxu0 0.0
    %1195 = vmatprep.mubr.f32.mxu0 0.0
    %1196 = vmatmul.mubr.f32.gmra.mrb[0].mxu0 %v1129
    %v1197 = vpop.f32.mrb[0].mxu0
    %v1198 = vadd.f32 %v1127, %v1197
    %v1199 = vpop.f32.mrb[0].mxu0
    %1200 = vdwg.mxu0
    %v1201 = vsel %vm212, %v1198, 0.0
    %v1202 = vrot.slane %v1201, 4
    %v1203 = vadd.f32 %v1201, %v1202
    %v1204 = vrot.slane %v1203, 2
    %v1205 = vadd.f32 %v1203, %v1204
    %v1206 = vrot.slane %v1205, 1
    %v1207 = vadd.f32 %v1205, %v1206
    %v1208 = vmul.f32 %v1207, 0.125
    %v1209 = vmul.f32 %v1198, %v1198
    %v1210 = vsel %vm212, %v1209, 0.0
    %v1211 = vrot.slane %v1210, 4
    %v1212 = vadd.f32 %v1210, %v1211
    %v1213 = vrot.slane %v1212, 2
    %v1214 = vadd.f32 %v1212, %v1213
    %v1215 = vrot.slane %v1214, 1
    %v1216 = vadd.f32 %v1214, %v1215
    %v1217 = vmul.f32 %v1216, 0.125
    %v1218 = vmul.f32 %v1208, %v1208
    %v1219 = vsub.f32 %v1217, %v1218
    %v1220 = vsub.f32 %v1198, %v1208
    %v1221 = vadd.f32 %v1219, 1e-05
    %v1222 = vrsqrt.pop %v1221
    %v1223 = vmul.f32 %v1220, %v1222
    %v1224 = vlaneseq
    %v1225 = vshrl.u32 %v1224, 7
    %v1226 = vsub.s32 0, %v1225
    %v1227 = vrot.slane %v75, %v1226
    %v1228 = vmul.f32 %v1223, %v1227
    %v1229 = vlaneseq
    %v1230 = vshrl.u32 %v1229, 7
    %v1231 = vsub.s32 0, %v1230
    %v1232 = vrot.slane %v74, %v1231
    %v1233 = vadd.f32 %v1228, %v1232
    %v1234 = vxor.u32 %v1233, 2147483648
    %v1235 = vmul.f32 %v1234, 1.442695
    %v1236 = vpow.pop %v1235
    %v1237 = vadd.f32 %v1236, 1.0
    %v1238 = vrcp.pop %v1237
    %v1239 = vmul.f32 1.0, %v1238
    %1241 = vrot.lane.b32.xlu0 %v1239, 112
    %v1242 = vpop.permute.xlu0 %1241
    %v1244 = vmul.f32 %v1233, %v1242
    %v1245 = vadd.f32 %v1123, %v1244
    %v1246 = vmul.f32 %v1245, 0.70710677
    %v1247 = vmax.f32 %v1246, 0.0
    %v1248 = vadd.f32 %v1247, 0.0
    %v1249 = vlaneseq
    %v1250 = vshrl.u32 %v1249, 7
    %v1251 = vsub.s32 0, %v1250
    %v1252 = vrot.slane %v45, %v1251
    %1254 = vrot.lane.b32.xlu0 %v1246, 120
    %v1255 = vpop.permute.xlu0 %1254
    %v1256 = vsel %vm633, %v1255, 0
    %1258 = vmatprep.subr.mxu0 0.0
    %1259 = vmatpush1.msra.mxu0 %v44
    %1260 = vmatprep.subr.mxu0 0.0
    %1261 = vmatpush1.msra.mxu0 0.0
    %1262 = vmatprep.subr.mxu0 0.0
    %1263 = vmatpush1.msra.mxu0 0.0
    %1264 = vmatprep.subr.mxu0 0.0
    %1265 = vmatpush1.msra.mxu0 0.0
    %1266 = vmatprep.subr.mxu0 0.0
    %1267 = vmatpush1.msra.mxu0 0.0
    %1268 = vmatprep.subr.mxu0 0.0
    %1269 = vmatpush1.msra.mxu0 0.0
    %1270 = vmatprep.subr.mxu0 0.0
    %1271 = vmatpush1.msra.mxu0 0.0
    %1272 = vmatprep.subr.mxu0 0.0
    %1273 = vmatpush1.msra.mxu0 0.0
    %1274 = vmatprep.subr.mxu0 0.0
    %1275 = vmatpush1.msra.mxu0 0.0
    %1276 = vmatprep.subr.mxu0 0.0
    %1277 = vmatpush1.msra.mxu0 0.0
    %1278 = vmatprep.subr.mxu0 0.0
    %1279 = vmatpush1.msra.mxu0 0.0
    %1280 = vmatprep.subr.mxu0 0.0
    %1281 = vmatpush1.msra.mxu0 0.0
    %1282 = vmatprep.subr.mxu0 0.0
    %1283 = vmatpush1.msra.mxu0 0.0
    %1284 = vmatprep.subr.mxu0 0.0
    %1285 = vmatpush1.msra.mxu0 0.0
    %1286 = vmatprep.subr.mxu0 0.0
    %1287 = vmatpush1.msra.mxu0 0.0
    %1288 = vmatprep.subr.mxu0 0.0
    %1289 = vmatpush1.msra.mxu0 0.0
    %1290 = vmatprep.subr.mxu0 0.0
    %1291 = vmatpush1.msra.mxu0 0.0
    %1292 = vmatprep.subr.mxu0 0.0
    %1293 = vmatpush1.msra.mxu0 0.0
    %1294 = vmatprep.subr.mxu0 0.0
    %1295 = vmatpush1.msra.mxu0 0.0
    %1296 = vmatprep.subr.mxu0 0.0
    %1297 = vmatpush1.msra.mxu0 0.0
    %1298 = vmatprep.subr.mxu0 0.0
    %1299 = vmatpush1.msra.mxu0 0.0
    %1300 = vmatprep.subr.mxu0 0.0
    %1301 = vmatpush1.msra.mxu0 0.0
    %1302 = vmatprep.subr.mxu0 0.0
    %1303 = vmatpush1.msra.mxu0 0.0
    %1304 = vmatprep.subr.mxu0 0.0
    %1305 = vmatpush1.msra.mxu0 0.0
    %1306 = vmatprep.subr.mxu0 0.0
    %1307 = vmatpush1.msra.mxu0 0.0
    %1308 = vmatprep.subr.mxu0 0.0
    %1309 = vmatpush1.msra.mxu0 0.0
    %1310 = vmatprep.subr.mxu0 0.0
    %1311 = vmatpush1.msra.mxu0 0.0
    %1312 = vmatprep.subr.mxu0 0.0
    %1313 = vmatpush1.msra.mxu0 0.0
    %1314 = vmatprep.subr.mxu0 0.0
    %1315 = vmatpush1.msra.mxu0 0.0
    %1316 = vmatprep.subr.mxu0 0.0
    %1317 = vmatpush1.msra.mxu0 0.0
    %1318 = vmatprep.subr.mxu0 0.0
    %1319 = vmatpush1.msra.mxu0 0.0
    %1320 = vmatprep.subr.mxu0 0.0
    %1321 = vmatpush1.msra.mxu0 0.0
    %1322 = vmatprep.mubr.f32.mxu0 0.0
    %1323 = vmatmul.mubr.f32.gmra.mrb[0].mxu0 %v1256
    %v1324 = vpop.f32.mrb[0].mxu0
    %v1325 = vadd.f32 %v1252, %v1324
    %v1326 = vpop.f32.mrb[0].mxu0
    %1327 = vdwg.mxu0
    %v1328 = vsel %vm101, %v1325, 0.0
    %v1329 = vrot.slane %v1328, 4
    %v1330 = vadd.f32 %v1328, %v1329
    %v1331 = vrot.slane %v1330, 2
    %v1332 = vadd.f32 %v1330, %v1331
    %v1333 = vrot.slane %v1332, 1
    %v1334 = vadd.f32 %v1332, %v1333
    %v1335 = vmul.f32 %v1334, 0.125
    %v1336 = vmul.f32 %v1325, %v1325
    %v1337 = vsel %vm101, %v1336, 0.0
    %v1338 = vrot.slane %v1337, 4
    %v1339 = vadd.f32 %v1337, %v1338
    %v1340 = vrot.slane %v1339, 2
    %v1341 = vadd.f32 %v1339, %v1340
    %v1342 = vrot.slane %v1341, 1
    %v1343 = vadd.f32 %v1341, %v1342
    %v1344 = vmul.f32 %v1343, 0.125
    %v1345 = vmul.f32 %v1335, %v1335
    %v1346 = vsub.f32 %v1344, %v1345
    %v1347 = vsub.f32 %v1325, %v1335
    %v1348 = vadd.f32 %v1346, 1e-05
    %v1349 = vrsqrt.pop %v1348
    %v1350 = vmul.f32 %v1347, %v1349
    %v1351 = vlaneseq
    %v1352 = vshrl.u32 %v1351, 7
    %v1353 = vsub.s32 0, %v1352
    %v1354 = vrot.slane %v47, %v1353
    %v1355 = vmul.f32 %v1350, %v1354
    %v1356 = vlaneseq
    %v1357 = vshrl.u32 %v1356, 7
    %v1358 = vsub.s32 0, %v1357
    %v1359 = vrot.slane %v46, %v1358
    %v1360 = vadd.f32 %v1355, %v1359
    %v1361 = vxor.u32 %v1360, 2147483648
    %v1362 = vmul.f32 %v1361, 1.442695
    %v1363 = vpow.pop %v1362
    %v1364 = vadd.f32 %v1363, 1.0
    %v1365 = vrcp.pop %v1364
    %v1366 = vmul.f32 1.0, %v1365
    %v1367 = vsub.f32 0.0, %v1366
    %v1368 = vadd.f32 %v1366, 1e-10
    %v1369 = vlog2.pop %v1368
    %v1370 = vmul.f32 %v1369, 0.6931472
    %v1371 = vmul.f32 %v1367, %v1370
    %v1372 = vsel %vm101, %v1371, 0.0
    %1373 = vadd.xlane.f32.xlu0 %v1372
    %v1374 = vpop.xlane.xlu0 %1373
    %v1375 = vrot.slane %v1374, 4
    %v1376 = vadd.f32 %v1374, %v1375
    %v1377 = vrot.slane %v1376, 2
    %v1378 = vadd.f32 %v1376, %v1377
    %v1379 = vrot.slane %v1378, 1
    %v1380 = vadd.f32 %v1378, %v1379
    %s1381 = vtos %v1380
    %v1382 = vrcp.pop 128.0
    %s1383 = vtos %v1382
    %s1384 = smul.f32 %s1381, %s1383
    %s1385 = sadd.f32 %s763, %s1384
    %v1386 = vmul.f32 %v134, %v1366
    %v1388 = vsel %vm101, %v1386, 0
    %1390 = vmatprep.subr.mxu0 0.0
    %1391 = vmatpush1.msra.mxu0 %v94
    %1392 = vmatprep.subr.mxu0 0.0
    %1393 = vmatpush1.msra.mxu0 %v95
    %1394 = vmatprep.subr.mxu0 0.0
    %1395 = vmatpush1.msra.mxu0 0.0
    %1396 = vmatprep.subr.mxu0 0.0
    %1397 = vmatpush1.msra.mxu0 0.0
    %1398 = vmatprep.subr.mxu0 0.0
    %1399 = vmatpush1.msra.mxu0 0.0
    %1400 = vmatprep.subr.mxu0 0.0
    %1401 = vmatpush1.msra.mxu0 0.0
    %1402 = vmatprep.subr.mxu0 0.0
    %1403 = vmatpush1.msra.mxu0 0.0
    %1404 = vmatprep.subr.mxu0 0.0
    %1405 = vmatpush1.msra.mxu0 0.0
    %1406 = vmatprep.subr.mxu0 0.0
    %1407 = vmatpush1.msra.mxu0 0.0
    %1408 = vmatprep.subr.mxu0 0.0
    %1409 = vmatpush1.msra.mxu0 0.0
    %1410 = vmatprep.subr.mxu0 0.0
    %1411 = vmatpush1.msra.mxu0 0.0
    %1412 = vmatprep.subr.mxu0 0.0
    %1413 = vmatpush1.msra.mxu0 0.0
    %1414 = vmatprep.subr.mxu0 0.0
    %1415 = vmatpush1.msra.mxu0 0.0
    %1416 = vmatprep.subr.mxu0 0.0
    %1417 = vmatpush1.msra.mxu0 0.0
    %1418 = vmatprep.subr.mxu0 0.0
    %1419 = vmatpush1.msra.mxu0 0.0
    %1420 = vmatprep.subr.mxu0 0.0
    %1421 = vmatpush1.msra.mxu0 0.0
    %1422 = vmatprep.subr.mxu0 0.0
    %1423 = vmatpush1.msra.mxu0 0.0
    %1424 = vmatprep.subr.mxu0 0.0
    %1425 = vmatpush1.msra.mxu0 0.0
    %1426 = vmatprep.subr.mxu0 0.0
    %1427 = vmatpush1.msra.mxu0 0.0
    %1428 = vmatprep.subr.mxu0 0.0
    %1429 = vmatpush1.msra.mxu0 0.0
    %1430 = vmatprep.subr.mxu0 0.0
    %1431 = vmatpush1.msra.mxu0 0.0
    %1432 = vmatprep.subr.mxu0 0.0
    %1433 = vmatpush1.msra.mxu0 0.0
    %1434 = vmatprep.subr.mxu0 0.0
    %1435 = vmatpush1.msra.mxu0 0.0
    %1436 = vmatprep.subr.mxu0 0.0
    %1437 = vmatpush1.msra.mxu0 0.0
    %1438 = vmatprep.subr.mxu0 0.0
    %1439 = vmatpush1.msra.mxu0 0.0
    %1440 = vmatprep.subr.mxu0 0.0
    %1441 = vmatpush1.msra.mxu0 0.0
    %1442 = vmatprep.subr.mxu0 0.0
    %1443 = vmatpush1.msra.mxu0 0.0
    %1444 = vmatprep.subr.mxu0 0.0
    %1445 = vmatpush1.msra.mxu0 0.0
    %1446 = vmatprep.subr.mxu0 0.0
    %1447 = vmatpush1.msra.mxu0 0.0
    %1448 = vmatprep.subr.mxu0 0.0
    %1449 = vmatpush1.msra.mxu0 0.0
    %1450 = vmatprep.subr.mxu0 0.0
    %1451 = vmatpush1.msra.mxu0 0.0
    %1452 = vmatprep.subr.mxu0 0.0
    %1453 = vmatpush1.msra.mxu0 0.0
    %1454 = vmatprep.mubr.f32.mxu0 0.0
    %1455 = vmatmul.mubr.f32.gmra.mrb[0].mxu0 %v1388
    %v1456 = vpop.f32.mrb[0].mxu0
    %v1457 = vadd.f32 %v138, %v1456
    %v1458 = vpop.f32.mrb[0].mxu0
    %1459 = vdwg.mxu0
    %v1460 = vsel %vm212, %v1457, 0.0
    %v1461 = vrot.slane %v1460, 4
    %v1462 = vadd.f32 %v1460, %v1461
    %v1463 = vrot.slane %v1462, 2
    %v1464 = vadd.f32 %v1462, %v1463
    %v1465 = vrot.slane %v1464, 1
    %v1466 = vadd.f32 %v1464, %v1465
    %v1467 = vmul.f32 %v1466, 0.125
    %v1468 = vmul.f32 %v1457, %v1457
    %v1469 = vsel %vm212, %v1468, 0.0
    %v1470 = vrot.slane %v1469, 4
    %v1471 = vadd.f32 %v1469, %v1470
    %v1472 = vrot.slane %v1471, 2
    %v1473 = vadd.f32 %v1471, %v1472
    %v1474 = vrot.slane %v1473, 1
    %v1475 = vadd.f32 %v1473, %v1474
    %v1476 = vmul.f32 %v1475, 0.125
    %v1477 = vmul.f32 %v1467, %v1467
    %v1478 = vsub.f32 %v1476, %v1477
    %v1479 = vsub.f32 %v1457, %v1467
    %v1480 = vadd.f32 %v1478, 1e-05
    %v1481 = vrsqrt.pop %v1480
    %v1482 = vmul.f32 %v1479, %v1481
    %v1483 = vlaneseq
    %v1484 = vshrl.u32 %v1483, 7
    %v1485 = vsub.s32 0, %v1484
    %v1486 = vrot.slane %v91, %v1485
    %v1487 = vmul.f32 %v1482, %v1486
    %v1488 = vlaneseq
    %v1489 = vshrl.u32 %v1488, 7
    %v1490 = vsub.s32 0, %v1489
    %v1491 = vrot.slane %v90, %v1490
    %v1492 = vadd.f32 %v1487, %v1491
    %v1493 = vxor.u32 %v1492, 2147483648
    %v1494 = vmul.f32 %v1493, 1.442695
    %v1495 = vpow.pop %v1494
    %v1496 = vadd.f32 %v1495, 1.0
    %v1497 = vrcp.pop %v1496
    %v1498 = vmul.f32 1.0, %v1497
    %1500 = vrot.lane.b32.xlu0 %v1498, 112
    %v1501 = vpop.permute.xlu0 %1500
    %v1503 = vmul.f32 %v1492, %v1501
    %v1505 = vsel %vm101, %v1503, 0
    %1507 = vmatprep.subr.mxu0 0.0
    %1508 = vmatpush1.msra.mxu0 %v97
    %1509 = vmatprep.subr.mxu0 0.0
    %1510 = vmatpush1.msra.mxu0 %v98
    %1511 = vmatprep.subr.mxu0 0.0
    %1512 = vmatpush1.msra.mxu0 0.0
    %1513 = vmatprep.subr.mxu0 0.0
    %1514 = vmatpush1.msra.mxu0 0.0
    %1515 = vmatprep.subr.mxu0 0.0
    %1516 = vmatpush1.msra.mxu0 0.0
    %1517 = vmatprep.subr.mxu0 0.0
    %1518 = vmatpush1.msra.mxu0 0.0
    %1519 = vmatprep.subr.mxu0 0.0
    %1520 = vmatpush1.msra.mxu0 0.0
    %1521 = vmatprep.subr.mxu0 0.0
    %1522 = vmatpush1.msra.mxu0 0.0
    %1523 = vmatprep.subr.mxu0 0.0
    %1524 = vmatpush1.msra.mxu0 0.0
    %1525 = vmatprep.subr.mxu0 0.0
    %1526 = vmatpush1.msra.mxu0 0.0
    %1527 = vmatprep.subr.mxu0 0.0
    %1528 = vmatpush1.msra.mxu0 0.0
    %1529 = vmatprep.subr.mxu0 0.0
    %1530 = vmatpush1.msra.mxu0 0.0
    %1531 = vmatprep.subr.mxu0 0.0
    %1532 = vmatpush1.msra.mxu0 0.0
    %1533 = vmatprep.subr.mxu0 0.0
    %1534 = vmatpush1.msra.mxu0 0.0
    %1535 = vmatprep.subr.mxu0 0.0
    %1536 = vmatpush1.msra.mxu0 0.0
    %1537 = vmatprep.subr.mxu0 0.0
    %1538 = vmatpush1.msra.mxu0 0.0
    %1539 = vmatprep.subr.mxu0 0.0
    %1540 = vmatpush1.msra.mxu0 0.0
    %1541 = vmatprep.subr.mxu0 0.0
    %1542 = vmatpush1.msra.mxu0 0.0
    %1543 = vmatprep.subr.mxu0 0.0
    %1544 = vmatpush1.msra.mxu0 0.0
    %1545 = vmatprep.subr.mxu0 0.0
    %1546 = vmatpush1.msra.mxu0 0.0
    %1547 = vmatprep.subr.mxu0 0.0
    %1548 = vmatpush1.msra.mxu0 0.0
    %1549 = vmatprep.subr.mxu0 0.0
    %1550 = vmatpush1.msra.mxu0 0.0
    %1551 = vmatprep.subr.mxu0 0.0
    %1552 = vmatpush1.msra.mxu0 0.0
    %1553 = vmatprep.subr.mxu0 0.0
    %1554 = vmatpush1.msra.mxu0 0.0
    %1555 = vmatprep.subr.mxu0 0.0
    %1556 = vmatpush1.msra.mxu0 0.0
    %1557 = vmatprep.subr.mxu0 0.0
    %1558 = vmatpush1.msra.mxu0 0.0
    %1559 = vmatprep.subr.mxu0 0.0
    %1560 = vmatpush1.msra.mxu0 0.0
    %1561 = vmatprep.subr.mxu0 0.0
    %1562 = vmatpush1.msra.mxu0 0.0
    %1563 = vmatprep.subr.mxu0 0.0
    %1564 = vmatpush1.msra.mxu0 0.0
    %1565 = vmatprep.subr.mxu0 0.0
    %1566 = vmatpush1.msra.mxu0 0.0
    %1567 = vmatprep.subr.mxu0 0.0
    %1568 = vmatpush1.msra.mxu0 0.0
    %1569 = vmatprep.subr.mxu0 0.0
    %1570 = vmatpush1.msra.mxu0 0.0
    %1571 = vmatprep.mubr.f32.mxu0 0.0
    %1572 = vmatmul.mubr.f32.gmra.mrb[0].mxu0 %v1505
    %v1573 = vpop.f32.mrb[0].mxu0
    %v1574 = vadd.f32 %v260, %v1573
    %v1575 = vpop.f32.mrb[0].mxu0
    %1576 = vdwg.mxu0
    %v1577 = vsel %vm212, %v1574, 0.0
    %v1578 = vrot.slane %v1577, 4
    %v1579 = vadd.f32 %v1577, %v1578
    %v1580 = vrot.slane %v1579, 2
    %v1581 = vadd.f32 %v1579, %v1580
    %v1582 = vrot.slane %v1581, 1
    %v1583 = vadd.f32 %v1581, %v1582
    %v1584 = vmul.f32 %v1583, 0.125
    %v1585 = vmul.f32 %v1574, %v1574
    %v1586 = vsel %vm212, %v1585, 0.0
    %v1587 = vrot.slane %v1586, 4
    %v1588 = vadd.f32 %v1586, %v1587
    %v1589 = vrot.slane %v1588, 2
    %v1590 = vadd.f32 %v1588, %v1589
    %v1591 = vrot.slane %v1590, 1
    %v1592 = vadd.f32 %v1590, %v1591
    %v1593 = vmul.f32 %v1592, 0.125
    %v1594 = vmul.f32 %v1584, %v1584
    %v1595 = vsub.f32 %v1593, %v1594
    %v1596 = vsub.f32 %v1574, %v1584
    %v1597 = vadd.f32 %v1595, 1e-05
    %v1598 = vrsqrt.pop %v1597
    %v1599 = vmul.f32 %v1596, %v1598
    %v1600 = vlaneseq
    %v1601 = vshrl.u32 %v1600, 7
    %v1602 = vsub.s32 0, %v1601
    %v1603 = vrot.slane %v93, %v1602
    %v1604 = vmul.f32 %v1599, %v1603
    %v1605 = vlaneseq
    %v1606 = vshrl.u32 %v1605, 7
    %v1607 = vsub.s32 0, %v1606
    %v1608 = vrot.slane %v92, %v1607
    %v1609 = vadd.f32 %v1604, %v1608
    %v1610 = vxor.u32 %v1609, 2147483648
    %v1611 = vmul.f32 %v1610, 1.442695
    %v1612 = vpow.pop %v1611
    %v1613 = vadd.f32 %v1612, 1.0
    %v1614 = vrcp.pop %v1613
    %v1615 = vmul.f32 1.0, %v1614
    %1617 = vrot.lane.b32.xlu0 %v1615, 112
    %v1618 = vpop.permute.xlu0 %1617
    %v1620 = vmul.f32 %v1609, %v1618
    %v1621 = vadd.f32 %v1503, %v1620
    %v1622 = vmul.f32 %v1621, 0.70710677
    %v1623 = vlaneseq
    %v1624 = vshrl.u32 %v1623, 7
    %v1625 = vsub.s32 0, %v1624
    %v1626 = vrot.slane %v82, %v1625
    %v1628 = vsel %vm101, %v1622, 0
    %1630 = vmatprep.subr.mxu0 0.0
    %1631 = vmatpush1.msra.mxu0 %v80
    %1632 = vmatprep.subr.mxu0 0.0
    %1633 = vmatpush1.msra.mxu0 %v81
    %1634 = vmatprep.subr.mxu0 0.0
    %1635 = vmatpush1.msra.mxu0 0.0
    %1636 = vmatprep.subr.mxu0 0.0
    %1637 = vmatpush1.msra.mxu0 0.0
    %1638 = vmatprep.subr.mxu0 0.0
    %1639 = vmatpush1.msra.mxu0 0.0
    %1640 = vmatprep.subr.mxu0 0.0
    %1641 = vmatpush1.msra.mxu0 0.0
    %1642 = vmatprep.subr.mxu0 0.0
    %1643 = vmatpush1.msra.mxu0 0.0
    %1644 = vmatprep.subr.mxu0 0.0
    %1645 = vmatpush1.msra.mxu0 0.0
    %1646 = vmatprep.subr.mxu0 0.0
    %1647 = vmatpush1.msra.mxu0 0.0
    %1648 = vmatprep.subr.mxu0 0.0
    %1649 = vmatpush1.msra.mxu0 0.0
    %1650 = vmatprep.subr.mxu0 0.0
    %1651 = vmatpush1.msra.mxu0 0.0
    %1652 = vmatprep.subr.mxu0 0.0
    %1653 = vmatpush1.msra.mxu0 0.0
    %1654 = vmatprep.subr.mxu0 0.0
    %1655 = vmatpush1.msra.mxu0 0.0
    %1656 = vmatprep.subr.mxu0 0.0
    %1657 = vmatpush1.msra.mxu0 0.0
    %1658 = vmatprep.subr.mxu0 0.0
    %1659 = vmatpush1.msra.mxu0 0.0
    %1660 = vmatprep.subr.mxu0 0.0
    %1661 = vmatpush1.msra.mxu0 0.0
    %1662 = vmatprep.subr.mxu0 0.0
    %1663 = vmatpush1.msra.mxu0 0.0
    %1664 = vmatprep.subr.mxu0 0.0
    %1665 = vmatpush1.msra.mxu0 0.0
    %1666 = vmatprep.subr.mxu0 0.0
    %1667 = vmatpush1.msra.mxu0 0.0
    %1668 = vmatprep.subr.mxu0 0.0
    %1669 = vmatpush1.msra.mxu0 0.0
    %1670 = vmatprep.subr.mxu0 0.0
    %1671 = vmatpush1.msra.mxu0 0.0
    %1672 = vmatprep.subr.mxu0 0.0
    %1673 = vmatpush1.msra.mxu0 0.0
    %1674 = vmatprep.subr.mxu0 0.0
    %1675 = vmatpush1.msra.mxu0 0.0
    %1676 = vmatprep.subr.mxu0 0.0
    %1677 = vmatpush1.msra.mxu0 0.0
    %1678 = vmatprep.subr.mxu0 0.0
    %1679 = vmatpush1.msra.mxu0 0.0
    %1680 = vmatprep.subr.mxu0 0.0
    %1681 = vmatpush1.msra.mxu0 0.0
    %1682 = vmatprep.subr.mxu0 0.0
    %1683 = vmatpush1.msra.mxu0 0.0
    %1684 = vmatprep.subr.mxu0 0.0
    %1685 = vmatpush1.msra.mxu0 0.0
    %1686 = vmatprep.subr.mxu0 0.0
    %1687 = vmatpush1.msra.mxu0 0.0
    %1688 = vmatprep.subr.mxu0 0.0
    %1689 = vmatpush1.msra.mxu0 0.0
    %1690 = vmatprep.subr.mxu0 0.0
    %1691 = vmatpush1.msra.mxu0 0.0
    %1692 = vmatprep.subr.mxu0 0.0
    %1693 = vmatpush1.msra.mxu0 0.0
    %1694 = vmatprep.mubr.f32.mxu0 0.0
    %1695 = vmatmul.mubr.f32.gmra.mrb[0].mxu0 %v1628
    %v1696 = vpop.f32.mrb[0].mxu0
    %v1697 = vadd.f32 %v1626, %v1696
    %v1698 = vpop.f32.mrb[0].mxu0
    %1699 = vdwg.mxu0
    %v1700 = vsel %vm212, %v1697, 0.0
    %v1701 = vrot.slane %v1700, 4
    %v1702 = vadd.f32 %v1700, %v1701
    %v1703 = vrot.slane %v1702, 2
    %v1704 = vadd.f32 %v1702, %v1703
    %v1705 = vrot.slane %v1704, 1
    %v1706 = vadd.f32 %v1704, %v1705
    %v1707 = vmul.f32 %v1706, 0.125
    %v1708 = vmul.f32 %v1697, %v1697
    %v1709 = vsel %vm212, %v1708, 0.0
    %v1710 = vrot.slane %v1709, 4
    %v1711 = vadd.f32 %v1709, %v1710
    %v1712 = vrot.slane %v1711, 2
    %v1713 = vadd.f32 %v1711, %v1712
    %v1714 = vrot.slane %v1713, 1
    %v1715 = vadd.f32 %v1713, %v1714
    %v1716 = vmul.f32 %v1715, 0.125
    %v1717 = vmul.f32 %v1707, %v1707
    %v1718 = vsub.f32 %v1716, %v1717
    %v1719 = vsub.f32 %v1697, %v1707
    %v1720 = vadd.f32 %v1718, 1e-05
    %v1721 = vrsqrt.pop %v1720
    %v1722 = vmul.f32 %v1719, %v1721
    %v1723 = vlaneseq
    %v1724 = vshrl.u32 %v1723, 7
    %v1725 = vsub.s32 0, %v1724
    %v1726 = vrot.slane %v84, %v1725
    %v1727 = vmul.f32 %v1722, %v1726
    %v1728 = vlaneseq
    %v1729 = vshrl.u32 %v1728, 7
    %v1730 = vsub.s32 0, %v1729
    %v1731 = vrot.slane %v83, %v1730
    %v1732 = vadd.f32 %v1727, %v1731
    %v1733 = vxor.u32 %v1732, 2147483648
    %v1734 = vmul.f32 %v1733, 1.442695
    %v1735 = vpow.pop %v1734
    %v1736 = vadd.f32 %v1735, 1.0
    %v1737 = vrcp.pop %v1736
    %v1738 = vmul.f32 1.0, %v1737
    %1740 = vrot.lane.b32.xlu0 %v1738, 112
    %v1741 = vpop.permute.xlu0 %1740
    %v1743 = vmul.f32 %v1732, %v1741
    %v1744 = vadd.f32 %v1622, %v1743
    %v1745 = vmul.f32 %v1744, 0.70710677
    %v1746 = vlaneseq
    %v1747 = vshrl.u32 %v1746, 7
    %v1748 = vsub.s32 0, %v1747
    %v1749 = vrot.slane %v87, %v1748
    %v1751 = vsel %vm101, %v1745, 0
    %1753 = vmatprep.subr.mxu0 0.0
    %1754 = vmatpush1.msra.mxu0 %v85
    %1755 = vmatprep.subr.mxu0 0.0
    %1756 = vmatpush1.msra.mxu0 %v86
    %1757 = vmatprep.subr.mxu0 0.0
    %1758 = vmatpush1.msra.mxu0 0.0
    %1759 = vmatprep.subr.mxu0 0.0
    %1760 = vmatpush1.msra.mxu0 0.0
    %1761 = vmatprep.subr.mxu0 0.0
    %1762 = vmatpush1.msra.mxu0 0.0
    %1763 = vmatprep.subr.mxu0 0.0
    %1764 = vmatpush1.msra.mxu0 0.0
    %1765 = vmatprep.subr.mxu0 0.0
    %1766 = vmatpush1.msra.mxu0 0.0
    %1767 = vmatprep.subr.mxu0 0.0
    %1768 = vmatpush1.msra.mxu0 0.0
    %1769 = vmatprep.subr.mxu0 0.0
    %1770 = vmatpush1.msra.mxu0 0.0
    %1771 = vmatprep.subr.mxu0 0.0
    %1772 = vmatpush1.msra.mxu0 0.0
    %1773 = vmatprep.subr.mxu0 0.0
    %1774 = vmatpush1.msra.mxu0 0.0
    %1775 = vmatprep.subr.mxu0 0.0
    %1776 = vmatpush1.msra.mxu0 0.0
    %1777 = vmatprep.subr.mxu0 0.0
    %1778 = vmatpush1.msra.mxu0 0.0
    %1779 = vmatprep.subr.mxu0 0.0
    %1780 = vmatpush1.msra.mxu0 0.0
    %1781 = vmatprep.subr.mxu0 0.0
    %1782 = vmatpush1.msra.mxu0 0.0
    %1783 = vmatprep.subr.mxu0 0.0
    %1784 = vmatpush1.msra.mxu0 0.0
    %1785 = vmatprep.subr.mxu0 0.0
    %1786 = vmatpush1.msra.mxu0 0.0
    %1787 = vmatprep.subr.mxu0 0.0
    %1788 = vmatpush1.msra.mxu0 0.0
    %1789 = vmatprep.subr.mxu0 0.0
    %1790 = vmatpush1.msra.mxu0 0.0
    %1791 = vmatprep.subr.mxu0 0.0
    %1792 = vmatpush1.msra.mxu0 0.0
    %1793 = vmatprep.subr.mxu0 0.0
    %1794 = vmatpush1.msra.mxu0 0.0
    %1795 = vmatprep.subr.mxu0 0.0
    %1796 = vmatpush1.msra.mxu0 0.0
    %1797 = vmatprep.subr.mxu0 0.0
    %1798 = vmatpush1.msra.mxu0 0.0
    %1799 = vmatprep.subr.mxu0 0.0
    %1800 = vmatpush1.msra.mxu0 0.0
    %1801 = vmatprep.subr.mxu0 0.0
    %1802 = vmatpush1.msra.mxu0 0.0
    %1803 = vmatprep.subr.mxu0 0.0
    %1804 = vmatpush1.msra.mxu0 0.0
    %1805 = vmatprep.subr.mxu0 0.0
    %1806 = vmatpush1.msra.mxu0 0.0
    %1807 = vmatprep.subr.mxu0 0.0
    %1808 = vmatpush1.msra.mxu0 0.0
    %1809 = vmatprep.subr.mxu0 0.0
    %1810 = vmatpush1.msra.mxu0 0.0
    %1811 = vmatprep.subr.mxu0 0.0
    %1812 = vmatpush1.msra.mxu0 0.0
    %1813 = vmatprep.subr.mxu0 0.0
    %1814 = vmatpush1.msra.mxu0 0.0
    %1815 = vmatprep.subr.mxu0 0.0
    %1816 = vmatpush1.msra.mxu0 0.0
    %1817 = vmatprep.mubr.f32.mxu0 0.0
    %1818 = vmatmul.mubr.f32.gmra.mrb[0].mxu0 %v1751
    %v1819 = vpop.f32.mrb[0].mxu0
    %v1820 = vadd.f32 %v1749, %v1819
    %v1821 = vpop.f32.mrb[0].mxu0
    %1822 = vdwg.mxu0
    %v1823 = vsel %vm212, %v1820, 0.0
    %v1824 = vrot.slane %v1823, 4
    %v1825 = vadd.f32 %v1823, %v1824
    %v1826 = vrot.slane %v1825, 2
    %v1827 = vadd.f32 %v1825, %v1826
    %v1828 = vrot.slane %v1827, 1
    %v1829 = vadd.f32 %v1827, %v1828
    %v1830 = vmul.f32 %v1829, 0.125
    %v1831 = vmul.f32 %v1820, %v1820
    %v1832 = vsel %vm212, %v1831, 0.0
    %v1833 = vrot.slane %v1832, 4
    %v1834 = vadd.f32 %v1832, %v1833
    %v1835 = vrot.slane %v1834, 2
    %v1836 = vadd.f32 %v1834, %v1835
    %v1837 = vrot.slane %v1836, 1
    %v1838 = vadd.f32 %v1836, %v1837
    %v1839 = vmul.f32 %v1838, 0.125
    %v1840 = vmul.f32 %v1830, %v1830
    %v1841 = vsub.f32 %v1839, %v1840
    %v1842 = vsub.f32 %v1820, %v1830
    %v1843 = vadd.f32 %v1841, 1e-05
    %v1844 = vrsqrt.pop %v1843
    %v1845 = vmul.f32 %v1842, %v1844
    %v1846 = vlaneseq
    %v1847 = vshrl.u32 %v1846, 7
    %v1848 = vsub.s32 0, %v1847
    %v1849 = vrot.slane %v89, %v1848
    %v1850 = vmul.f32 %v1845, %v1849
    %v1851 = vlaneseq
    %v1852 = vshrl.u32 %v1851, 7
    %v1853 = vsub.s32 0, %v1852
    %v1854 = vrot.slane %v88, %v1853
    %v1855 = vadd.f32 %v1850, %v1854
    %v1856 = vxor.u32 %v1855, 2147483648
    %v1857 = vmul.f32 %v1856, 1.442695
    %v1858 = vpow.pop %v1857
    %v1859 = vadd.f32 %v1858, 1.0
    %v1860 = vrcp.pop %v1859
    %v1861 = vmul.f32 1.0, %v1860
    %1863 = vrot.lane.b32.xlu0 %v1861, 112
    %v1864 = vpop.permute.xlu0 %1863
    %v1866 = vmul.f32 %v1855, %v1864
    %v1867 = vadd.f32 %v1745, %v1866
    %v1868 = vmul.f32 %v1867, 0.70710677
    %v1869 = vmax.f32 %v1868, 0.0
    %v1870 = vadd.f32 %v1248, %v1869
    %v1871 = vlaneseq
    %v1872 = vshrl.u32 %v1871, 7
    %v1873 = vsub.s32 0, %v1872
    %v1874 = vrot.slane %v51, %v1873
    %v1876 = vsel %vm633, %v1870, 0
    %1878 = vmatprep.subr.mxu0 0.0
    %1879 = vmatpush1.msra.mxu0 %v50
    %1880 = vmatprep.subr.mxu0 0.0
    %1881 = vmatpush1.msra.mxu0 0.0
    %1882 = vmatprep.subr.mxu0 0.0
    %1883 = vmatpush1.msra.mxu0 0.0
    %1884 = vmatprep.subr.mxu0 0.0
    %1885 = vmatpush1.msra.mxu0 0.0
    %1886 = vmatprep.subr.mxu0 0.0
    %1887 = vmatpush1.msra.mxu0 0.0
    %1888 = vmatprep.subr.mxu0 0.0
    %1889 = vmatpush1.msra.mxu0 0.0
    %1890 = vmatprep.subr.mxu0 0.0
    %1891 = vmatpush1.msra.mxu0 0.0
    %1892 = vmatprep.subr.mxu0 0.0
    %1893 = vmatpush1.msra.mxu0 0.0
    %1894 = vmatprep.subr.mxu0 0.0
    %1895 = vmatpush1.msra.mxu0 0.0
    %1896 = vmatprep.subr.mxu0 0.0
    %1897 = vmatpush1.msra.mxu0 0.0
    %1898 = vmatprep.subr.mxu0 0.0
    %1899 = vmatpush1.msra.mxu0 0.0
    %1900 = vmatprep.subr.mxu0 0.0
    %1901 = vmatpush1.msra.mxu0 0.0
    %1902 = vmatprep.subr.mxu0 0.0
    %1903 = vmatpush1.msra.mxu0 0.0
    %1904 = vmatprep.subr.mxu0 0.0
    %1905 = vmatpush1.msra.mxu0 0.0
    %1906 = vmatprep.subr.mxu0 0.0
    %1907 = vmatpush1.msra.mxu0 0.0
    %1908 = vmatprep.subr.mxu0 0.0
    %1909 = vmatpush1.msra.mxu0 0.0
    %1910 = vmatprep.subr.mxu0 0.0
    %1911 = vmatpush1.msra.mxu0 0.0
    %1912 = vmatprep.subr.mxu0 0.0
    %1913 = vmatpush1.msra.mxu0 0.0
    %1914 = vmatprep.subr.mxu0 0.0
    %1915 = vmatpush1.msra.mxu0 0.0
    %1916 = vmatprep.subr.mxu0 0.0
    %1917 = vmatpush1.msra.mxu0 0.0
    %1918 = vmatprep.subr.mxu0 0.0
    %1919 = vmatpush1.msra.mxu0 0.0
    %1920 = vmatprep.subr.mxu0 0.0
    %1921 = vmatpush1.msra.mxu0 0.0
    %1922 = vmatprep.subr.mxu0 0.0
    %1923 = vmatpush1.msra.mxu0 0.0
    %1924 = vmatprep.subr.mxu0 0.0
    %1925 = vmatpush1.msra.mxu0 0.0
    %1926 = vmatprep.subr.mxu0 0.0
    %1927 = vmatpush1.msra.mxu0 0.0
    %1928 = vmatprep.subr.mxu0 0.0
    %1929 = vmatpush1.msra.mxu0 0.0
    %1930 = vmatprep.subr.mxu0 0.0
    %1931 = vmatpush1.msra.mxu0 0.0
    %1932 = vmatprep.subr.mxu0 0.0
    %1933 = vmatpush1.msra.mxu0 0.0
    %1934 = vmatprep.subr.mxu0 0.0
    %1935 = vmatpush1.msra.mxu0 0.0
    %1936 = vmatprep.subr.mxu0 0.0
    %1937 = vmatpush1.msra.mxu0 0.0
    %1938 = vmatprep.subr.mxu0 0.0
    %1939 = vmatpush1.msra.mxu0 0.0
    %1940 = vmatprep.subr.mxu0 0.0
    %1941 = vmatpush1.msra.mxu0 0.0
    %1942 = vmatprep.mubr.f32.mxu0 0.0
    %1943 = vmatmul.mubr.f32.gmra.mrb[0].mxu0 %v1876
    %v1944 = vpop.f32.mrb[0].mxu0
    %v1945 = vadd.f32 %v1874, %v1944
    %v1946 = vpop.f32.mrb[0].mxu0
    %1947 = vdwg.mxu0
    %vm1948 = vcmask 31744
    %1949 = vst.msk [vmem:[%s2] sm:$0xff] %vm1948, %v1945
    %v1950 = vstv %s1385
    %vm1951 = vcmask 0
    %1952 = vst.msk [vmem:[#allocation7] sm:$0x1] %vm1951, %v1950
    // Predicated region
    $region18: #{tpu_custom_call.1} parent=1 // pred_check
      _
    $region19: #{tpu_custom_call.1} parent=1 // pred_check_branch
      %1954 = sbr.rel (0) target = $region21
    $region20: #{tpu_custom_call.1} parent=1 // pred_region
      _
    $region21: #{tpu_custom_call.1} parent=1 // pred_fallthru
      _
    // Predicated region
    $region22: #{tpu_custom_call.1} parent=1 // pred_check
      _
    $region23: #{tpu_custom_call.1} parent=1 // pred_check_branch
      %1956 = sbr.rel (0) target = $region25
    $region24: #{tpu_custom_call.1} parent=1 // pred_region
      %s1958 = ssub.s32 16, 16
      %1959 = vsyncadd [#allocation4], %s1958
      %s1961 = sshll.u32 [#allocation7], 4
      %s1962 = int_to_ptr.vmem [resolvable:$true] %s1961
      %1964 = dma.vmem_to_hbm [thread:$0]  %s1962, 16, %s3, [#allocation4]
    $region25: #{tpu_custom_call.1} parent=1 // pred_fallthru
      _
    // Predicated region
    $region26: #{tpu_custom_call.1} parent=1 // pred_check
      _
    $region27: #{tpu_custom_call.1} parent=1 // pred_check_branch
      %1966 = sbr.rel (0) target = $region29
    $region28: #{tpu_custom_call.1} parent=1 // pred_region
      _
    $region29: #{tpu_custom_call.1} parent=1 // pred_fallthru
      _
    // Predicated region
    $region30: #{tpu_custom_call.1} parent=1 // pred_check
      _
    $region31: #{tpu_custom_call.1} parent=1 // pred_check_branch
      %1968 = sbr.rel (0) target = $region33
    $region32: #{tpu_custom_call.1} parent=1 // pred_region
      %1969 = dma.done [#allocation4], 16
    $region33: #{tpu_custom_call.1} parent=1 // pred_fallthru
      _
    %1970 = vsyncpa [#allocation3], 1
    %1971 = vsyncpa [#allocation6], 1
    %1972 = vsyncpa [#allocation4], 1

</llo_original>
